<compile_context>
chip_gen: v6e
topology: v6e:2x2x1
jax: 0.10.0
libtpu: 0.0.40
codegen_flags: <defaults>
</compile_context>

<pallas_src>
import functools
import math

import jax
import jax.numpy as jnp
from jax import lax
from jax.experimental import pallas as pl
from jax.experimental.pallas import tpu as pltpu

# ---------------------------------------------------------------------------
# Manifold constants (Poincaré ball with curvature -C)
# ---------------------------------------------------------------------------
C = 1.0
RC = C ** 0.5
BALL_EPS = 4e-3                       # geoopt float32 projection epsilon
MAXNORM = (1.0 - BALL_EPS) / RC


def _round_up(a, b):
    return ((a + b - 1) // b) * b


@functools.lru_cache(maxsize=None)
def _tpu_kind():
    try:
        return jax.devices()[0].device_kind.lower()
    except Exception:
        return ""


@functools.lru_cache(maxsize=None)
def _vmem_limit():
    """Generation-dependent scoped-VMEM limit (leave ~25% headroom)."""
    try:
        cap = int(pltpu.get_tpu_info().vmem_capacity_bytes)
    except Exception:
        kind = _tpu_kind()
        if "v5" in kind or "v6" in kind:
            cap = 128 * 1024 * 1024
        else:
            cap = 64 * 1024 * 1024          # v7x / unknown: be conservative
    return int(cap * 3 // 4)


@functools.lru_cache(maxsize=None)
def _default_tm():
    kind = _tpu_kind()
    # v5e MXU is 4x128^2 -> 128 rows; v6e/v7x MXUs are 2x256^2 -> 256 rows.
    if "v5 lite" in kind or "v5e" in kind or "v5litepod" in kind:
        return 128
    return 256


def _pick_tile(n, target):
    """Largest divisor of n that is <= target (avoids padding/masking)."""
    if n <= target:
        return n
    for t in range(target, 0, -1):
        if n % t == 0:
            return t
    return n


_HAS_BUFFERED = hasattr(pl, "Buffered")


# ---------------------------------------------------------------------------
# Numerically-safe transcendentals (usable inside Pallas kernels and JAX glue)
# ---------------------------------------------------------------------------
def _asinh(x):
    a = jnp.abs(x)
    r = jnp.log(a + jnp.sqrt(a * a + 1.0))
    return jnp.where(x >= 0.0, r, -r)


def _artanh(x):
    x = jnp.clip(x, -1.0 + 1e-7, 1.0 - 1e-7)
    return 0.5 * jnp.log((1.0 + x) / (1.0 - x))


# ---------------------------------------------------------------------------
# Plain-JAX manifold glue (cheap elementwise, outside the kernels)
# ---------------------------------------------------------------------------
def _project(x):
    n = jnp.sqrt(jnp.maximum(jnp.sum(x * x, -1, keepdims=True), 1e-30))
    return jnp.where(n > MAXNORM, x * (MAXNORM / n), x)


def _logmap0(x):
    n = jnp.maximum(jnp.sqrt(jnp.maximum(jnp.sum(x * x, -1, keepdims=True), 1e-30)), 1e-15)
    return _artanh(RC * n) * x / (RC * n)


def _expmap0(u):
    n = jnp.maximum(jnp.sqrt(jnp.maximum(jnp.sum(u * u, -1, keepdims=True), 1e-30)), 1e-15)
    return _project(jnp.tanh(RC * n) * u / (RC * n))


def _mobius_add(x, y):
    x2 = jnp.sum(x * x, -1, keepdims=True)
    y2 = jnp.sum(y * y, -1, keepdims=True)
    xy = jnp.sum(x * y, -1, keepdims=True)
    num = (1.0 + 2.0 * C * xy + C * y2) * x + (1.0 - C * x2) * y
    den = 1.0 + 2.0 * C * xy + (C ** 2) * x2 * y2
    return _project(num / jnp.maximum(den, 1e-15))


def _beta(a, b):
    return math.exp(math.lgamma(a) + math.lgamma(b) - math.lgamma(a + b))


# ---------------------------------------------------------------------------
# Kernel 1: PoincareLinear hot path (row-tiled, weights resident)
#   Poincaré MLR matmul + sinh, per-split ball projection via thin selector
#   matmuls, HNN++ beta rescale fused into the tail.
# ---------------------------------------------------------------------------
def _poincare_linear_kernel(x_ref, zu_ref, zn_ref, b_ref, sel_ref, selt_ref, o_ref,
                            *, out_split, beta_scale):
    x = x_ref[...]                                                   # (TM, Din)
    cx2 = C * jnp.sum(x * x, axis=-1, keepdims=True)                 # (TM, 1)
    xz = RC * jnp.dot(x, zu_ref[...], preferred_element_type=jnp.float32)   # (TM, Dout)

    # cosh/sinh of the (tiny, per-column) bias term — exact exp(+/-x) so the
    # sinh cancellation is exact when bias == 0 (review: numerics).
    drcr = 2.0 * RC * b_ref[...]                                     # (1, Dout)
    e_p = jnp.exp(drcr)
    e_n = jnp.exp(-drcr)
    ch = 0.5 * (e_p + e_n)
    sh = 0.5 * (e_p - e_n)

    inv_den = 1.0 / jnp.maximum(1.0 - cx2, 1e-15)                    # (TM, 1)
    arg = (2.0 * xz * ch - (1.0 + cx2) * sh) * inv_den
    mlr = (2.0 / RC) * zn_ref[...] * _asinh(arg)                     # (TM, Dout)

    # sinh(RC*mlr)/RC with exact exp(-x); clamp the exponent (not the asinh
    # argument) so the bound is independent of the trained column norms.
    rm = jnp.clip(RC * mlr, -80.0, 80.0)
    y = (0.5 / RC) * (jnp.exp(rm) - jnp.exp(-rm))                    # (TM, Dout)

    # per-split sum of squares via thin selector matmuls (K = Dout, then
    # K = out_split) — dh-times less MXU work than a (Dout,Dout) mask matmul.
    if out_split == 1:
        ssf = jnp.sum(y * y, axis=-1, keepdims=True)                 # (TM, 1)
    else:
        ssf = jnp.dot(y * y, sel_ref[...],
                      preferred_element_type=jnp.float32)            # (TM, out_split)

    rt = jnp.sqrt(ssf)
    n_p = rt / (1.0 + jnp.sqrt(1.0 + C * ssf))                       # per-split norm
    n_c = jnp.minimum(n_p, MAXNORM)                                  # ball projection

    if beta_scale != 1.0:
        # fused HNN++ beta rescale: expmap0(beta * logmap0(p)) on each split
        m = jnp.tanh(beta_scale * _artanh(RC * n_c)) / RC
        m = jnp.minimum(m, MAXNORM)
    else:
        m = n_c
    fac = m / jnp.maximum(rt, 1e-15)                                 # (TM, out_split)

    if out_split == 1:
        o_ref[...] = y * fac
    else:
        o_ref[...] = y * jnp.dot(fac, selt_ref[...],
                                 preferred_element_type=jnp.float32)


def poincare_linear_pallas(x2d, z_unit, z_norm, bias, out_split, beta_scale=1.0, tm=None):
    n, din = x2d.shape
    dout = z_unit.shape[1]
    dh = dout // out_split

    if tm is None:
        tm = _default_tm()
    tm = min(tm, _round_up(n, 8))
    n_pad = _round_up(n, tm)
    xp = x2d if n_pad == n else jnp.pad(x2d, ((0, n_pad - n), (0, 0)))

    # thin per-split column selectors (Dout, out_split) and its transpose
    col = jnp.arange(dout) // dh
    sel = (col[:, None] == jnp.arange(out_split)[None, :]).astype(jnp.float32)
    selt = sel.T

    kernel = functools.partial(_poincare_linear_kernel,
                               out_split=out_split, beta_scale=float(beta_scale))

    def _call(single_buffer):
        def const_spec(shape):
            # constant-index operands (weights / bias / selectors): resident
            if single_buffer:
                return pl.BlockSpec(shape, lambda i: (0,) * len(shape),
                                    pipeline_mode=pl.Buffered(1))
            return pl.BlockSpec(shape, lambda i: (0,) * len(shape))

        return pl.pallas_call(
            kernel,
            out_shape=jax.ShapeDtypeStruct((n_pad, dout), jnp.float32),
            grid=(n_pad // tm,),
            in_specs=[
                pl.BlockSpec((tm, din), lambda i: (i, 0)),   # x rows (pipelined)
                const_spec((din, dout)),
                const_spec((1, dout)),
                const_spec((1, dout)),
                const_spec((dout, out_split)),
                const_spec((out_split, dout)),
            ],
            out_specs=pl.BlockSpec((tm, dout), lambda i: (i, 0)),
            compiler_params=pltpu.CompilerParams(
                dimension_semantics=("parallel",),
                vmem_limit_bytes=_vmem_limit()),
        )(xp, z_unit, z_norm.reshape(1, dout), bias.reshape(1, dout), sel, selt)

    if _HAS_BUFFERED:
        try:
            out = _call(True)
        except Exception:
            out = _call(False)
    else:
        out = _call(False)
    return out[:n]


# ---------------------------------------------------------------------------
# Kernel 2: hyperbolic attention hot path
#   grid = (batch, q-tiles, head, kv-tiles); fp32 nom/den accumulators in
#   VMEM scratch; closed-form exp(-distance) weights; gyromidpoint + Möbius
#   half-scalar-mult finalize.  Reads/writes the natural (B,S,H,dh) layout.
# ---------------------------------------------------------------------------
def _hyp_attention_kernel(q_ref, k_ref, v_ref, o_ref, nom_ref, den_ref):
    hi = pl.program_id(2)
    ki = pl.program_id(3)
    nk = pl.num_programs(3)

    @pl.when(ki == 0)
    def _init():
        nom_ref[...] = jnp.zeros_like(nom_ref)
        den_ref[...] = jnp.zeros_like(den_ref)

    # per-head slices (dynamic sublane slice; block layout stays (S, H, dh))
    q = q_ref[0, :, pl.ds(hi, 1), :][:, 0, :]                         # (TQ, dh)
    k = k_ref[0, :, pl.ds(hi, 1), :][:, 0, :]                         # (TKV, dh)
    v = v_ref[0, :, pl.ds(hi, 1), :][:, 0, :]                         # (TKV, dh)
    dh = q.shape[-1]
    ones_row = jnp.ones((1, dh), jnp.float32)

    # column-form stats
    q2 = jnp.sum(q * q, axis=-1, keepdims=True)                       # (TQ, 1)
    k2c = jnp.sum(k * k, axis=-1, keepdims=True)                      # (TKV, 1)
    v2c = jnp.sum(v * v, axis=-1, keepdims=True)                      # (TKV, 1)
    iq = 1.0 / jnp.maximum(1.0 - C * q2, 1e-15)
    ikc = 1.0 / jnp.maximum(1.0 - C * k2c, 1e-15)
    tq_col = (1.0 + C * q2) * iq                                      # (TQ, 1)
    uq = (2.0 * RC * iq) * q                                          # (TQ, dh)
    uk = (2.0 * RC * ikc) * k                                         # (TKV, dh)

    # row-form key/value stats via tiny M=1 matmuls (no minor-axis concats
    # or reshapes; lands lane-aligned for the rank-1 VPU update below).
    k2r = lax.dot_general(ones_row, k * k, (((1,), (1,)), ((), ())),
                          preferred_element_type=jnp.float32)         # (1, TKV)
    v2r = lax.dot_general(ones_row, v * v, (((1,), (1,)), ((), ())),
                          preferred_element_type=jnp.float32)         # (1, TKV)
    tk_row = (1.0 + C * k2r) / jnp.maximum(1.0 - C * k2r, 1e-15)      # (1, TKV)
    gm1_row = 2.0 / jnp.maximum(1.0 - C * v2r, 1e-15) - 1.0           # (1, TKV)

    # cosh(sqrt(c)*d(q,k)) = t_q t_k - <u_q, u_k>   (hyperboloid lift)
    m = lax.dot_general(uq, uk, (((1,), (1,)), ((), ())),
                        preferred_element_type=jnp.float32)           # (TQ, TKV)
    arg = jnp.maximum(tq_col * tk_row - m, 1.0)

    # attention weights exp(-d) = (arg + sqrt(arg^2-1))^(-1/sqrt(c)); closed
    # form for c == 1 — no acosh, no exp, no row-max (weights already <= 1,
    # and the gyromidpoint ratio is invariant to the per-row weight scale).
    if RC == 1.0:
        p = pl.reciprocal(arg + jnp.sqrt(arg * arg - 1.0), approx=True)
    else:
        p = jnp.exp(-jnp.log(arg + jnp.sqrt(arg * arg - 1.0)) / RC)

    # gyromidpoint accumulators (fp32); PV matmul in bf16 with fp32 accum.
    den_ref[...] += jnp.sum(p * gm1_row, axis=-1, keepdims=True)      # (TQ, 1)
    gv = (2.0 / jnp.maximum(1.0 - C * v2c, 1e-15)) * v                # (TKV, dh)
    nom_ref[...] += jnp.dot(p.astype(jnp.bfloat16), gv.astype(jnp.bfloat16),
                            preferred_element_type=jnp.float32)       # (TQ, dh)

    @pl.when(ki == nk - 1)
    def _finalize():
        den = jnp.maximum(den_ref[...], 1e-10)
        two_mean = nom_ref[...] / den                                 # (TQ, dh)
        # mobius_scalar_mul(0.5, x) = x / (1 + sqrt(1 - c|x|^2)), then project
        t2 = jnp.sum(two_mean * two_mean, axis=-1, keepdims=True)
        inv = 1.0 / (1.0 + jnp.sqrt(jnp.maximum(1.0 - C * t2, 0.0)))
        a = two_mean * inv
        an = jnp.sqrt(t2) * inv
        a = jnp.where(an > MAXNORM, a * (MAXNORM / jnp.maximum(an, 1e-15)), a)
        o_ref[0, :, pl.ds(hi, 1), :] = a[:, None, :]


def hyp_attention_pallas(q, k, v, tq=None, tkv=None):
    b, s, h, dh = q.shape
    if tq is None:
        tq = _pick_tile(s, 256)
    if tkv is None:
        tkv = _pick_tile(s, 512)

    qspec = pl.BlockSpec((1, tq, h, dh), lambda bi, qi, hi, ki: (bi, qi, 0, 0))
    kvspec = pl.BlockSpec((1, tkv, h, dh), lambda bi, qi, hi, ki: (bi, ki, 0, 0))
    ospec = pl.BlockSpec((1, tq, h, dh), lambda bi, qi, hi, ki: (bi, qi, 0, 0))

    return pl.pallas_call(
        _hyp_attention_kernel,
        out_shape=jax.ShapeDtypeStruct((b, s, h, dh), jnp.float32),
        grid=(b, s // tq, h, s // tkv),
        in_specs=[qspec, kvspec, kvspec],
        out_specs=ospec,
        scratch_shapes=[pltpu.VMEM((tq, dh), jnp.float32),
                        pltpu.VMEM((tq, 1), jnp.float32)],
        compiler_params=pltpu.CompilerParams(
            dimension_semantics=("parallel", "parallel", "arbitrary", "arbitrary"),
            vmem_limit_bytes=_vmem_limit()),
    )(q, k, v)


# ---------------------------------------------------------------------------
# Pure-JAX references (for correctness check of the two kernels)
# ---------------------------------------------------------------------------
def poincare_linear_ref(x2d, z_unit, z_norm, bias, out_split, beta_scale=1.0, tm=None):
    cx2 = C * jnp.sum(x2d * x2d, -1, keepdims=True)
    xz = RC * (x2d @ z_unit)
    drcr = 2.0 * RC * bias[None, :]
    num = 2.0 * xz * jnp.cosh(drcr) - (1.0 + cx2) * jnp.sinh(drcr)
    den = jnp.maximum(1.0 - cx2, 1e-15)
    mlr = (2.0 * z_norm[None, :] / RC) * jnp.arcsinh(num / den)
    y = jnp.sinh(jnp.clip(RC * mlr, -80.0, 80.0)) / RC
    n, dout = y.shape
    dh = dout // out_split
    yc = y.reshape(n, out_split, dh)
    ss = jnp.sum(yc * yc, -1, keepdims=True)
    yc = _project(yc / (1.0 + jnp.sqrt(1.0 + C * ss)))
    if beta_scale != 1.0:
        yc = _expmap0(_logmap0(yc) * beta_scale)
    return yc.reshape(n, dout)


def hyp_attention_ref(q, k, v):
    # q,k,v: (B,S,H,dh) -> reference math in (B,H,S,dh)
    q = q.transpose(0, 2, 1, 3)
    k = k.transpose(0, 2, 1, 3)
    v = v.transpose(0, 2, 1, 3)
    q2 = jnp.sum(q * q, -1, keepdims=True)
    k2 = jnp.sum(k * k, -1, keepdims=True)
    qk = jnp.einsum("...qd,...kd->...qk", q, k)
    sq = jnp.maximum(q2 - 2.0 * qk + jnp.swapaxes(k2, -1, -2), 0.0)
    den = jnp.maximum((1.0 - C * q2) * (1.0 - C * jnp.swapaxes(k2, -1, -2)), 1e-15)
    dist = jnp.arccosh(jnp.maximum(1.0 + 2.0 * C * sq / den, 1.0)) / RC
    probs = jax.nn.softmax(-dist, axis=-1)
    v2 = jnp.sum(v * v, -1, keepdims=True)
    gamma = 2.0 / jnp.maximum(1.0 - C * v2, 1e-15)
    denom = jnp.maximum(jnp.einsum("...qk,...ko->...qo", probs, gamma - 1.0), 1e-10)
    nom = jnp.einsum("...qk,...kd->...qd", probs, gamma * v)
    two_mean = nom / denom
    tn = jnp.maximum(jnp.linalg.norm(two_mean, axis=-1, keepdims=True), 1e-15)
    a = jnp.tanh(0.5 * _artanh(RC * tn)) * two_mean / (RC * tn)
    a = _project(a)
    return a.transpose(0, 2, 1, 3)


# ---------------------------------------------------------------------------
# Module: parameter init + forward (Pallas or pure-JAX reference path)
# ---------------------------------------------------------------------------
def init_poincare_linear(key, in_dim, out_dim, out_split=1):
    std = (2.0 * in_dim * out_dim / out_split) ** -0.5
    w = std * jax.random.normal(key, (in_dim, out_dim), dtype=jnp.float32)
    col_norm = jnp.linalg.norm(w, axis=0)
    z_unit = w / jnp.maximum(col_norm[None, :], 1e-15)
    return dict(z_unit=z_unit, z_norm=col_norm,
                bias=jnp.zeros((out_dim,), jnp.float32),
                in_dim=in_dim, out_dim=out_dim, out_split=out_split)


def poincare_linear_apply(params, x, use_pallas=True):
    in_dim, out_dim, out_split = params["in_dim"], params["out_dim"], params["out_split"]
    dh = out_dim // out_split
    lead = x.shape[:-1]
    x2d = x.reshape(-1, in_dim)
    beta_scale = 1.0 if out_split == 1 else _beta(dh / 2.0, 0.5) / _beta(out_dim / 2.0, 0.5)
    fn = poincare_linear_pallas if use_pallas else poincare_linear_ref
    y = fn(x2d, params["z_unit"], params["z_norm"], params["bias"], out_split, beta_scale)
    if out_split > 1:
        return y.reshape(lead + (out_split, dh))
    return y.reshape(lead + (out_dim,))


def poincare_qkv_apply(params, x, use_pallas=True):
    """Fused Q/K/V PoincareLinear: one kernel launch, hidden_states read once,
    per-head ball projection + HNN++ beta rescale fused into the kernel."""
    pq, pk, pv = params["query"], params["key"], params["value"]
    H = params["num_heads"]
    din, dout = pq["in_dim"], pq["out_dim"]
    dh = dout // H
    lead = x.shape[:-1]
    x2d = x.reshape(-1, din)

    z_unit = jnp.concatenate([pq["z_unit"], pk["z_unit"], pv["z_unit"]], axis=1)
    z_norm = jnp.concatenate([pq["z_norm"], pk["z_norm"], pv["z_norm"]], axis=0)
    bias = jnp.concatenate([pq["bias"], pk["bias"], pv["bias"]], axis=0)

    beta_scale = _beta(dh / 2.0, 0.5) / _beta(dout / 2.0, 0.5)
    fn = poincare_linear_pallas if use_pallas else poincare_linear_ref
    y = fn(x2d, z_unit, z_norm, bias, 3 * H, beta_scale)                 # (N, 3*Dout)

    outs = []
    for i in range(3):
        outs.append(y[:, i * dout:(i + 1) * dout].reshape(lead + (H, dh)))
    return tuple(outs)


def hyperbolic_attention_forward(params, hidden_states, use_pallas=True):
    """HyperbolicAttention.forward with attention_mask=None, head_mask=None,
    no cross-attention, output_attentions=False, dropout in eval mode."""
    B, S, D = hidden_states.shape

    q, k, v = poincare_qkv_apply(params, hidden_states, use_pallas)      # (B,S,H,dh)

    attn = hyp_attention_pallas if use_pallas else hyp_attention_ref
    ctx = attn(q, k, v)                                                  # (B,S,H,dh)
    ctx = ctx.reshape(B, S, D)                                           # free reshape

    # MultiHeadAttentionOutput
    dense_out = poincare_linear_apply(params["dense"], ctx, use_pallas)  # (B,S,D)
    dense_out = _project(dense_out)   # mobius_fn_apply(eval-mode dropout) == project
    return _mobius_add(hidden_states, dense_out)


# ---------------------------------------------------------------------------
if __name__ == "__main__":
    B, S, D, H = 2, 8, 32, 4                  # hyperbolic_hidden_size=32, heads=4
    key = jax.random.PRNGKey(0)
    k_hs, kq, kk, kv, kd = jax.random.split(key, 5)

    # hidden states on the Poincaré ball (expmap0 of small tangent vectors)
    hidden_states = _expmap0(0.2 * jax.random.normal(k_hs, (B, S, D), dtype=jnp.float32))

    params = dict(
        num_heads=H,
        query=init_poincare_linear(kq, D, D, out_split=H),
        key=init_poincare_linear(kk, D, D, out_split=H),
        value=init_poincare_linear(kv, D, D, out_split=H),
        dense=init_poincare_linear(kd, D, D, out_split=1),
    )

    out = jax.block_until_ready(hyperbolic_attention_forward(params, hidden_states, use_pallas=True))
    ref = jax.block_until_ready(hyperbolic_attention_forward(params, hidden_states, use_pallas=False))

    assert out.shape == (B, S, D)
    assert bool(jnp.all(jnp.isfinite(out))), "non-finite output"
    max_err = float(jnp.max(jnp.abs(out - ref)))
    assert max_err < 5e-2, f"pallas vs reference mismatch: {max_err}"
    print("KERNEL_OK")
</pallas_src>

<mosaic_0001>
module attributes {stable_mosaic.version = 11 : i64} {
  func.func @_poincare_linear_kernel(%arg0: i32, %arg1: memref<16x32xf32, #tpu.memory_space<vmem>>, %arg2: memref<32x96xf32, #tpu.memory_space<vmem>>, %arg3: memref<1x96xf32, #tpu.memory_space<vmem>>, %arg4: memref<1x96xf32, #tpu.memory_space<vmem>>, %arg5: memref<96x12xf32, #tpu.memory_space<vmem>>, %arg6: memref<12x96xf32, #tpu.memory_space<vmem>>, %arg7: memref<16x96xf32, #tpu.memory_space<vmem>>) attributes {dimension_semantics = [#tpu.dimension_semantics<parallel>], iteration_bounds = array<i64: 1>, scalar_prefetch = 0 : i64, scratch_operands = 0 : i64, tpu.core_type = #tpu.core_type<tc>, window_params = [{transform_indices = @transform_0, window_bounds = array<i64: 16, 32>}, {pipeline_mode = #tpu.pipeline_mode<synchronous>, transform_indices = @transform_1, window_bounds = array<i64: 32, 96>}, {pipeline_mode = #tpu.pipeline_mode<synchronous>, transform_indices = @transform_2, window_bounds = array<i64: 1, 96>}, {pipeline_mode = #tpu.pipeline_mode<synchronous>, transform_indices = @transform_3, window_bounds = array<i64: 1, 96>}, {pipeline_mode = #tpu.pipeline_mode<synchronous>, transform_indices = @transform_4, window_bounds = array<i64: 96, 12>}, {pipeline_mode = #tpu.pipeline_mode<synchronous>, transform_indices = @transform_5, window_bounds = array<i64: 12, 96>}, {transform_indices = @transform_6, window_bounds = array<i64: 16, 96>}]} {
    %c0 = arith.constant 0 : index
    %c0_0 = arith.constant 0 : index
    %0 = vector.load %arg1[%c0, %c0_0] : memref<16x32xf32, #tpu.memory_space<vmem>>, vector<16x32xf32>
    %1 = arith.mulf %0, %0 : vector<16x32xf32>
    %cst = arith.constant dense<0.000000e+00> : vector<16xf32>
    %2 = vector.multi_reduction <add>, %1, %cst [1] : vector<16x32xf32> to vector<16xf32>
    %3 = vector.shape_cast %2 : vector<16xf32> to vector<16x1xf32>
    %cst_1 = arith.constant 1.000000e+00 : f32
    %4 = vector.broadcast %cst_1 : f32 to vector<16x1xf32>
    %5 = arith.mulf %4, %3 : vector<16x1xf32>
    %c0_2 = arith.constant 0 : index
    %c0_3 = arith.constant 0 : index
    %6 = vector.load %arg2[%c0_2, %c0_3] : memref<32x96xf32, #tpu.memory_space<vmem>>, vector<32x96xf32>
    %cst_4 = arith.constant dense<0.000000e+00> : vector<16x96xf32>
    %7 = tpu.matmul %0, %6, %cst_4 {dimension_numbers = #tpu.dot_dimension_numbers<[1], [0], [0], [1], [0, 0, 1, 1], [], []>} : vector<16x32xf32>, vector<32x96xf32>, vector<16x96xf32> -> vector<16x96xf32>
    %cst_5 = arith.constant 1.000000e+00 : f32
    %8 = vector.broadcast %cst_5 : f32 to vector<16x96xf32>
    %9 = arith.mulf %8, %7 : vector<16x96xf32>
    %c0_6 = arith.constant 0 : index
    %c0_7 = arith.constant 0 : index
    %10 = vector.load %arg4[%c0_6, %c0_7] : memref<1x96xf32, #tpu.memory_space<vmem>>, vector<1x96xf32>
    %cst_8 = arith.constant 2.000000e+00 : f32
    %11 = vector.broadcast %cst_8 : f32 to vector<1x96xf32>
    %12 = arith.mulf %11, %10 : vector<1x96xf32>
    %13 = math.exp %12 : vector<1x96xf32>
    %cst_9 = arith.constant 0.000000e+00 : f32
    %14 = vector.broadcast %cst_9 : f32 to vector<1x96xf32>
    %15 = arith.subf %14, %12 : vector<1x96xf32>
    %16 = math.exp %15 : vector<1x96xf32>
    %17 = arith.addf %13, %16 : vector<1x96xf32>
    %cst_10 = arith.constant 5.000000e-01 : f32
    %18 = vector.broadcast %cst_10 : f32 to vector<1x96xf32>
    %19 = arith.mulf %18, %17 : vector<1x96xf32>
    %20 = arith.subf %13, %16 : vector<1x96xf32>
    %cst_11 = arith.constant 5.000000e-01 : f32
    %21 = vector.broadcast %cst_11 : f32 to vector<1x96xf32>
    %22 = arith.mulf %21, %20 : vector<1x96xf32>
    %cst_12 = arith.constant 1.000000e+00 : f32
    %23 = vector.broadcast %cst_12 : f32 to vector<16x1xf32>
    %24 = arith.subf %23, %5 : vector<16x1xf32>
    %cst_13 = arith.constant 1.000000e-15 : f32
    %25 = vector.broadcast %cst_13 : f32 to vector<16x1xf32>
    %26 = arith.maximumf %24, %25 : vector<16x1xf32>
    %cst_14 = arith.constant 1.000000e+00 : f32
    %27 = vector.broadcast %cst_14 : f32 to vector<16x1xf32>
    %28 = arith.divf %27, %26 : vector<16x1xf32>
    %cst_15 = arith.constant 2.000000e+00 : f32
    %29 = vector.broadcast %cst_15 : f32 to vector<16x96xf32>
    %30 = arith.mulf %29, %9 : vector<16x96xf32>
    %31 = vector.broadcast %19 : vector<1x96xf32> to vector<16x96xf32>
    %32 = arith.mulf %30, %31 : vector<16x96xf32>
    %cst_16 = arith.constant 1.000000e+00 : f32
    %33 = vector.broadcast %cst_16 : f32 to vector<16x1xf32>
    %34 = arith.addf %33, %5 : vector<16x1xf32>
    %35 = vector.broadcast %34 : vector<16x1xf32> to vector<16x96xf32>
    %36 = vector.broadcast %22 : vector<1x96xf32> to vector<16x96xf32>
    %37 = arith.mulf %35, %36 : vector<16x96xf32>
    %38 = arith.subf %32, %37 : vector<16x96xf32>
    %39 = vector.broadcast %28 : vector<16x1xf32> to vector<16x96xf32>
    %40 = arith.mulf %38, %39 : vector<16x96xf32>
    %c0_17 = arith.constant 0 : index
    %c0_18 = arith.constant 0 : index
    %41 = vector.load %arg3[%c0_17, %c0_18] : memref<1x96xf32, #tpu.memory_space<vmem>>, vector<1x96xf32>
    %cst_19 = arith.constant 2.000000e+00 : f32
    %42 = vector.broadcast %cst_19 : f32 to vector<1x96xf32>
    %43 = arith.mulf %42, %41 : vector<1x96xf32>
    %44 = math.absf %40 : vector<16x96xf32>
    %45 = arith.mulf %44, %44 : vector<16x96xf32>
    %cst_20 = arith.constant 1.000000e+00 : f32
    %46 = vector.broadcast %cst_20 : f32 to vector<16x96xf32>
    %47 = arith.addf %45, %46 : vector<16x96xf32>
    %48 = math.sqrt %47 : vector<16x96xf32>
    %49 = arith.addf %44, %48 : vector<16x96xf32>
    %50 = math.log %49 : vector<16x96xf32>
    %cst_21 = arith.constant 0.000000e+00 : f32
    %51 = vector.broadcast %cst_21 : f32 to vector<16x96xf32>
    %52 = arith.cmpf oge, %40, %51 : vector<16x96xf32>
    %cst_22 = arith.constant 0.000000e+00 : f32
    %53 = vector.broadcast %cst_22 : f32 to vector<16x96xf32>
    %54 = arith.subf %53, %50 : vector<16x96xf32>
    %55 = arith.select %52, %50, %54 : vector<16x96xi1>, vector<16x96xf32>
    %56 = vector.broadcast %43 : vector<1x96xf32> to vector<16x96xf32>
    %57 = arith.mulf %56, %55 : vector<16x96xf32>
    %cst_23 = arith.constant 1.000000e+00 : f32
    %58 = vector.broadcast %cst_23 : f32 to vector<16x96xf32>
    %59 = arith.mulf %58, %57 : vector<16x96xf32>
    %cst_24 = arith.constant -8.000000e+01 : f32
    %cst_25 = arith.constant 8.000000e+01 : f32
    %60 = vector.broadcast %cst_24 : f32 to vector<16x96xf32>
    %61 = arith.maximumf %60, %59 : vector<16x96xf32>
    %62 = vector.broadcast %cst_25 : f32 to vector<16x96xf32>
    %63 = arith.minimumf %62, %61 : vector<16x96xf32>
    %64 = math.exp %63 : vector<16x96xf32>
    %cst_26 = arith.constant 0.000000e+00 : f32
    %65 = vector.broadcast %cst_26 : f32 to vector<16x96xf32>
    %66 = arith.subf %65, %63 : vector<16x96xf32>
    %67 = math.exp %66 : vector<16x96xf32>
    %68 = arith.subf %64, %67 : vector<16x96xf32>
    %cst_27 = arith.constant 5.000000e-01 : f32
    %69 = vector.broadcast %cst_27 : f32 to vector<16x96xf32>
    %70 = arith.mulf %69, %68 : vector<16x96xf32>
    %71 = arith.mulf %70, %70 : vector<16x96xf32>
    %c0_28 = arith.constant 0 : index
    %c0_29 = arith.constant 0 : index
    %72 = vector.load %arg5[%c0_28, %c0_29] : memref<96x12xf32, #tpu.memory_space<vmem>>, vector<96x12xf32>
    %cst_30 = arith.constant dense<0.000000e+00> : vector<16x12xf32>
    %73 = tpu.matmul %71, %72, %cst_30 {dimension_numbers = #tpu.dot_dimension_numbers<[1], [0], [0], [1], [0, 0, 1, 1], [], []>} : vector<16x96xf32>, vector<96x12xf32>, vector<16x12xf32> -> vector<16x12xf32>
    %74 = math.sqrt %73 : vector<16x12xf32>
    %cst_31 = arith.constant 1.000000e+00 : f32
    %75 = vector.broadcast %cst_31 : f32 to vector<16x12xf32>
    %76 = arith.mulf %75, %73 : vector<16x12xf32>
    %cst_32 = arith.constant 1.000000e+00 : f32
    %77 = vector.broadcast %cst_32 : f32 to vector<16x12xf32>
    %78 = arith.addf %77, %76 : vector<16x12xf32>
    %79 = math.sqrt %78 : vector<16x12xf32>
    %cst_33 = arith.constant 1.000000e+00 : f32
    %80 = vector.broadcast %cst_33 : f32 to vector<16x12xf32>
    %81 = arith.addf %80, %79 : vector<16x12xf32>
    %82 = arith.divf %74, %81 : vector<16x12xf32>
    %cst_34 = arith.constant 0.995999991 : f32
    %83 = vector.broadcast %cst_34 : f32 to vector<16x12xf32>
    %84 = arith.minimumf %82, %83 : vector<16x12xf32>
    %cst_35 = arith.constant 1.000000e+00 : f32
    %85 = vector.broadcast %cst_35 : f32 to vector<16x12xf32>
    %86 = arith.mulf %85, %84 : vector<16x12xf32>
    %cst_36 = arith.constant -0.99999988 : f32
    %cst_37 = arith.constant 0.99999988 : f32
    %87 = vector.broadcast %cst_36 : f32 to vector<16x12xf32>
    %88 = arith.maximumf %87, %86 : vector<16x12xf32>
    %89 = vector.broadcast %cst_37 : f32 to vector<16x12xf32>
    %90 = arith.minimumf %89, %88 : vector<16x12xf32>
    %cst_38 = arith.constant 1.000000e+00 : f32
    %91 = vector.broadcast %cst_38 : f32 to vector<16x12xf32>
    %92 = arith.addf %91, %90 : vector<16x12xf32>
    %cst_39 = arith.constant 1.000000e+00 : f32
    %93 = vector.broadcast %cst_39 : f32 to vector<16x12xf32>
    %94 = arith.subf %93, %90 : vector<16x12xf32>
    %95 = arith.divf %92, %94 : vector<16x12xf32>
    %96 = math.log %95 : vector<16x12xf32>
    %cst_40 = arith.constant 5.000000e-01 : f32
    %97 = vector.broadcast %cst_40 : f32 to vector<16x12xf32>
    %98 = arith.mulf %97, %96 : vector<16x12xf32>
    %cst_41 = arith.constant 2.04726768 : f32
    %99 = vector.broadcast %cst_41 : f32 to vector<16x12xf32>
    %100 = arith.mulf %99, %98 : vector<16x12xf32>
    %101 = math.tanh %100 : vector<16x12xf32>
    %cst_42 = arith.constant 1.000000e+00 : f32
    %102 = vector.broadcast %cst_42 : f32 to vector<16x12xf32>
    %103 = arith.divf %101, %102 : vector<16x12xf32>
    %cst_43 = arith.constant 0.995999991 : f32
    %104 = vector.broadcast %cst_43 : f32 to vector<16x12xf32>
    %105 = arith.minimumf %103, %104 : vector<16x12xf32>
    %cst_44 = arith.constant 1.000000e-15 : f32
    %106 = vector.broadcast %cst_44 : f32 to vector<16x12xf32>
    %107 = arith.maximumf %74, %106 : vector<16x12xf32>
    %108 = arith.divf %105, %107 : vector<16x12xf32>
    %c0_45 = arith.constant 0 : index
    %c0_46 = arith.constant 0 : index
    %109 = vector.load %arg6[%c0_45, %c0_46] : memref<12x96xf32, #tpu.memory_space<vmem>>, vector<12x96xf32>
    %cst_47 = arith.constant dense<0.000000e+00> : vector<16x96xf32>
    %110 = tpu.matmul %108, %109, %cst_47 {dimension_numbers = #tpu.dot_dimension_numbers<[1], [0], [0], [1], [0, 0, 1, 1], [], []>} : vector<16x12xf32>, vector<12x96xf32>, vector<16x96xf32> -> vector<16x96xf32>
    %111 = arith.mulf %70, %110 : vector<16x96xf32>
    %c0_48 = arith.constant 0 : index
    %c0_49 = arith.constant 0 : index
    %112 = vector.load %arg7[%c0_48, %c0_49] : memref<16x96xf32, #tpu.memory_space<vmem>>, vector<16x96xf32>
    tpu.vector_store %arg7[%c0_48, %c0_49], %111 {strides = array<i32>} : memref<16x96xf32, #tpu.memory_space<vmem>>, vector<16x96xf32>,
    return
  }
  func.func @transform_0(%arg0: i32) -> (i32, i32) {
    %c0_i32 = arith.constant 0 : i32
    %c0_i32_0 = arith.constant 0 : i32
    return %arg0, %c0_i32 : i32, i32
  }
  func.func @transform_1(%arg0: i32) -> (i32, i32) {
    %c0_i32 = arith.constant 0 : i32
    %c0_i32_0 = arith.constant 0 : i32
    %c0_i32_1 = arith.constant 0 : i32
    return %c0_i32, %c0_i32_0 : i32, i32
  }
  func.func @transform_2(%arg0: i32) -> (i32, i32) {
    %c0_i32 = arith.constant 0 : i32
    %c0_i32_0 = arith.constant 0 : i32
    %c0_i32_1 = arith.constant 0 : i32
    return %c0_i32, %c0_i32_0 : i32, i32
  }
  func.func @transform_3(%arg0: i32) -> (i32, i32) {
    %c0_i32 = arith.constant 0 : i32
    %c0_i32_0 = arith.constant 0 : i32
    %c0_i32_1 = arith.constant 0 : i32
    return %c0_i32, %c0_i32_0 : i32, i32
  }
  func.func @transform_4(%arg0: i32) -> (i32, i32) {
    %c0_i32 = arith.constant 0 : i32
    %c0_i32_0 = arith.constant 0 : i32
    %c0_i32_1 = arith.constant 0 : i32
    return %c0_i32, %c0_i32_0 : i32, i32
  }
  func.func @transform_5(%arg0: i32) -> (i32, i32) {
    %c0_i32 = arith.constant 0 : i32
    %c0_i32_0 = arith.constant 0 : i32
    %c0_i32_1 = arith.constant 0 : i32
    return %c0_i32, %c0_i32_0 : i32, i32
  }
  func.func @transform_6(%arg0: i32) -> (i32, i32) {
    %c0_i32 = arith.constant 0 : i32
    %c0_i32_0 = arith.constant 0 : i32
    return %arg0, %c0_i32 : i32, i32
  }
}

module attributes {stable_mosaic.version = 11 : i64} {
  func.func @_poincare_linear_kernel(%arg0: i32, %arg1: memref<16x32xf32, #tpu.memory_space<vmem>>, %arg2: memref<32x96xf32, #tpu.memory_space<vmem>>, %arg3: memref<1x96xf32, #tpu.memory_space<vmem>>, %arg4: memref<1x96xf32, #tpu.memory_space<vmem>>, %arg5: memref<96x12xf32, #tpu.memory_space<vmem>>, %arg6: memref<12x96xf32, #tpu.memory_space<vmem>>, %arg7: memref<16x96xf32, #tpu.memory_space<vmem>>) attributes {dimension_semantics = [#tpu.dimension_semantics<parallel>], iteration_bounds = array<i64: 1>, scalar_prefetch = 0 : i64, scratch_operands = 0 : i64, tpu.core_type = #tpu.core_type<tc>, window_params = [{transform_indices = @transform_0, window_bounds = array<i64: 16, 32>}, {pipeline_mode = #tpu.pipeline_mode<synchronous>, transform_indices = @transform_1, window_bounds = array<i64: 32, 96>}, {pipeline_mode = #tpu.pipeline_mode<synchronous>, transform_indices = @transform_2, window_bounds = array<i64: 1, 96>}, {pipeline_mode = #tpu.pipeline_mode<synchronous>, transform_indices = @transform_3, window_bounds = array<i64: 1, 96>}, {pipeline_mode = #tpu.pipeline_mode<synchronous>, transform_indices = @transform_4, window_bounds = array<i64: 96, 12>}, {pipeline_mode = #tpu.pipeline_mode<synchronous>, transform_indices = @transform_5, window_bounds = array<i64: 12, 96>}, {transform_indices = @transform_6, window_bounds = array<i64: 16, 96>}]} {
    %c0 = arith.constant 0 : index
    %c0_0 = arith.constant 0 : index
    %0 = vector.load %arg1[%c0, %c0_0] : memref<16x32xf32, #tpu.memory_space<vmem>>, vector<16x32xf32>
    %1 = arith.mulf %0, %0 : vector<16x32xf32>
    %cst = arith.constant dense<0.000000e+00> : vector<16xf32>
    %2 = vector.multi_reduction <add>, %1, %cst [1] : vector<16x32xf32> to vector<16xf32>
    %3 = vector.shape_cast %2 : vector<16xf32> to vector<16x1xf32>
    %cst_1 = arith.constant 1.000000e+00 : f32
    %4 = vector.broadcast %cst_1 : f32 to vector<16x1xf32>
    %5 = arith.mulf %4, %3 : vector<16x1xf32>
    %c0_2 = arith.constant 0 : index
    %c0_3 = arith.constant 0 : index
    %6 = vector.load %arg2[%c0_2, %c0_3] : memref<32x96xf32, #tpu.memory_space<vmem>>, vector<32x96xf32>
    %cst_4 = arith.constant dense<0.000000e+00> : vector<16x96xf32>
    %7 = tpu.matmul %0, %6, %cst_4 {dimension_numbers = #tpu.dot_dimension_numbers<[1], [0], [0], [1], [0, 0, 1, 1], [], []>} : vector<16x32xf32>, vector<32x96xf32>, vector<16x96xf32> -> vector<16x96xf32>
    %cst_5 = arith.constant 1.000000e+00 : f32
    %8 = vector.broadcast %cst_5 : f32 to vector<16x96xf32>
    %9 = arith.mulf %8, %7 : vector<16x96xf32>
    %c0_6 = arith.constant 0 : index
    %c0_7 = arith.constant 0 : index
    %10 = vector.load %arg4[%c0_6, %c0_7] : memref<1x96xf32, #tpu.memory_space<vmem>>, vector<1x96xf32>
    %cst_8 = arith.constant 2.000000e+00 : f32
    %11 = vector.broadcast %cst_8 : f32 to vector<1x96xf32>
    %12 = arith.mulf %11, %10 : vector<1x96xf32>
    %13 = math.exp %12 : vector<1x96xf32>
    %cst_9 = arith.constant 0.000000e+00 : f32
    %14 = vector.broadcast %cst_9 : f32 to vector<1x96xf32>
    %15 = arith.subf %14, %12 : vector<1x96xf32>
    %16 = math.exp %15 : vector<1x96xf32>
    %17 = arith.addf %13, %16 : vector<1x96xf32>
    %cst_10 = arith.constant 5.000000e-01 : f32
    %18 = vector.broadcast %cst_10 : f32 to vector<1x96xf32>
    %19 = arith.mulf %18, %17 : vector<1x96xf32>
    %20 = arith.subf %13, %16 : vector<1x96xf32>
    %cst_11 = arith.constant 5.000000e-01 : f32
    %21 = vector.broadcast %cst_11 : f32 to vector<1x96xf32>
    %22 = arith.mulf %21, %20 : vector<1x96xf32>
    %cst_12 = arith.constant 1.000000e+00 : f32
    %23 = vector.broadcast %cst_12 : f32 to vector<16x1xf32>
    %24 = arith.subf %23, %5 : vector<16x1xf32>
    %cst_13 = arith.constant 1.000000e-15 : f32
    %25 = vector.broadcast %cst_13 : f32 to vector<16x1xf32>
    %26 = arith.maximumf %24, %25 : vector<16x1xf32>
    %cst_14 = arith.constant 1.000000e+00 : f32
    %27 = vector.broadcast %cst_14 : f32 to vector<16x1xf32>
    %28 = arith.divf %27, %26 : vector<16x1xf32>
    %cst_15 = arith.constant 2.000000e+00 : f32
    %29 = vector.broadcast %cst_15 : f32 to vector<16x96xf32>
    %30 = arith.mulf %29, %9 : vector<16x96xf32>
    %31 = vector.broadcast %19 : vector<1x96xf32> to vector<16x96xf32>
    %32 = arith.mulf %30, %31 : vector<16x96xf32>
    %cst_16 = arith.constant 1.000000e+00 : f32
    %33 = vector.broadcast %cst_16 : f32 to vector<16x1xf32>
    %34 = arith.addf %33, %5 : vector<16x1xf32>
    %35 = vector.broadcast %34 : vector<16x1xf32> to vector<16x96xf32>
    %36 = vector.broadcast %22 : vector<1x96xf32> to vector<16x96xf32>
    %37 = arith.mulf %35, %36 : vector<16x96xf32>
    %38 = arith.subf %32, %37 : vector<16x96xf32>
    %39 = vector.broadcast %28 : vector<16x1xf32> to vector<16x96xf32>
    %40 = arith.mulf %38, %39 : vector<16x96xf32>
    %c0_17 = arith.constant 0 : index
    %c0_18 = arith.constant 0 : index
    %41 = vector.load %arg3[%c0_17, %c0_18] : memref<1x96xf32, #tpu.memory_space<vmem>>, vector<1x96xf32>
    %cst_19 = arith.constant 2.000000e+00 : f32
    %42 = vector.broadcast %cst_19 : f32 to vector<1x96xf32>
    %43 = arith.mulf %42, %41 : vector<1x96xf32>
    %44 = math.absf %40 : vector<16x96xf32>
    %45 = arith.mulf %44, %44 : vector<16x96xf32>
    %cst_20 = arith.constant 1.000000e+00 : f32
    %46 = vector.broadcast %cst_20 : f32 to vector<16x96xf32>
    %47 = arith.addf %45, %46 : vector<16x96xf32>
    %48 = math.sqrt %47 : vector<16x96xf32>
    %49 = arith.addf %44, %48 : vector<16x96xf32>
    %50 = math.log %49 : vector<16x96xf32>
    %cst_21 = arith.constant 0.000000e+00 : f32
    %51 = vector.broadcast %cst_21 : f32 to vector<16x96xf32>
    %52 = arith.cmpf oge, %40, %51 : vector<16x96xf32>
    %cst_22 = arith.constant 0.000000e+00 : f32
    %53 = vector.broadcast %cst_22 : f32 to vector<16x96xf32>
    %54 = arith.subf %53, %50 : vector<16x96xf32>
    %55 = arith.select %52, %50, %54 : vector<16x96xi1>, vector<16x96xf32>
    %56 = vector.broadcast %43 : vector<1x96xf32> to vector<16x96xf32>
    %57 = arith.mulf %56, %55 : vector<16x96xf32>
    %cst_23 = arith.constant 1.000000e+00 : f32
    %58 = vector.broadcast %cst_23 : f32 to vector<16x96xf32>
    %59 = arith.mulf %58, %57 : vector<16x96xf32>
    %cst_24 = arith.constant -8.000000e+01 : f32
    %cst_25 = arith.constant 8.000000e+01 : f32
    %60 = vector.broadcast %cst_24 : f32 to vector<16x96xf32>
    %61 = arith.maximumf %60, %59 : vector<16x96xf32>
    %62 = vector.broadcast %cst_25 : f32 to vector<16x96xf32>
    %63 = arith.minimumf %62, %61 : vector<16x96xf32>
    %64 = math.exp %63 : vector<16x96xf32>
    %cst_26 = arith.constant 0.000000e+00 : f32
    %65 = vector.broadcast %cst_26 : f32 to vector<16x96xf32>
    %66 = arith.subf %65, %63 : vector<16x96xf32>
    %67 = math.exp %66 : vector<16x96xf32>
    %68 = arith.subf %64, %67 : vector<16x96xf32>
    %cst_27 = arith.constant 5.000000e-01 : f32
    %69 = vector.broadcast %cst_27 : f32 to vector<16x96xf32>
    %70 = arith.mulf %69, %68 : vector<16x96xf32>
    %71 = arith.mulf %70, %70 : vector<16x96xf32>
    %c0_28 = arith.constant 0 : index
    %c0_29 = arith.constant 0 : index
    %72 = vector.load %arg5[%c0_28, %c0_29] : memref<96x12xf32, #tpu.memory_space<vmem>>, vector<96x12xf32>
    %cst_30 = arith.constant dense<0.000000e+00> : vector<16x12xf32>
    %73 = tpu.matmul %71, %72, %cst_30 {dimension_numbers = #tpu.dot_dimension_numbers<[1], [0], [0], [1], [0, 0, 1, 1], [], []>} : vector<16x96xf32>, vector<96x12xf32>, vector<16x12xf32> -> vector<16x12xf32>
    %74 = math.sqrt %73 : vector<16x12xf32>
    %cst_31 = arith.constant 1.000000e+00 : f32
    %75 = vector.broadcast %cst_31 : f32 to vector<16x12xf32>
    %76 = arith.mulf %75, %73 : vector<16x12xf32>
    %cst_32 = arith.constant 1.000000e+00 : f32
    %77 = vector.broadcast %cst_32 : f32 to vector<16x12xf32>
    %78 = arith.addf %77, %76 : vector<16x12xf32>
    %79 = math.sqrt %78 : vector<16x12xf32>
    %cst_33 = arith.constant 1.000000e+00 : f32
    %80 = vector.broadcast %cst_33 : f32 to vector<16x12xf32>
    %81 = arith.addf %80, %79 : vector<16x12xf32>
    %82 = arith.divf %74, %81 : vector<16x12xf32>
    %cst_34 = arith.constant 0.995999991 : f32
    %83 = vector.broadcast %cst_34 : f32 to vector<16x12xf32>
    %84 = arith.minimumf %82, %83 : vector<16x12xf32>
    %cst_35 = arith.constant 1.000000e+00 : f32
    %85 = vector.broadcast %cst_35 : f32 to vector<16x12xf32>
    %86 = arith.mulf %85, %84 : vector<16x12xf32>
    %cst_36 = arith.constant -0.99999988 : f32
    %cst_37 = arith.constant 0.99999988 : f32
    %87 = vector.broadcast %cst_36 : f32 to vector<16x12xf32>
    %88 = arith.maximumf %87, %86 : vector<16x12xf32>
    %89 = vector.broadcast %cst_37 : f32 to vector<16x12xf32>
    %90 = arith.minimumf %89, %88 : vector<16x12xf32>
    %cst_38 = arith.constant 1.000000e+00 : f32
    %91 = vector.broadcast %cst_38 : f32 to vector<16x12xf32>
    %92 = arith.addf %91, %90 : vector<16x12xf32>
    %cst_39 = arith.constant 1.000000e+00 : f32
    %93 = vector.broadcast %cst_39 : f32 to vector<16x12xf32>
    %94 = arith.subf %93, %90 : vector<16x12xf32>
    %95 = arith.divf %92, %94 : vector<16x12xf32>
    %96 = math.log %95 : vector<16x12xf32>
    %cst_40 = arith.constant 5.000000e-01 : f32
    %97 = vector.broadcast %cst_40 : f32 to vector<16x12xf32>
    %98 = arith.mulf %97, %96 : vector<16x12xf32>
    %cst_41 = arith.constant 2.04726768 : f32
    %99 = vector.broadcast %cst_41 : f32 to vector<16x12xf32>
    %100 = arith.mulf %99, %98 : vector<16x12xf32>
    %101 = math.tanh %100 : vector<16x12xf32>
    %cst_42 = arith.constant 1.000000e+00 : f32
    %102 = vector.broadcast %cst_42 : f32 to vector<16x12xf32>
    %103 = arith.divf %101, %102 : vector<16x12xf32>
    %cst_43 = arith.constant 0.995999991 : f32
    %104 = vector.broadcast %cst_43 : f32 to vector<16x12xf32>
    %105 = arith.minimumf %103, %104 : vector<16x12xf32>
    %cst_44 = arith.constant 1.000000e-15 : f32
    %106 = vector.broadcast %cst_44 : f32 to vector<16x12xf32>
    %107 = arith.maximumf %74, %106 : vector<16x12xf32>
    %108 = arith.divf %105, %107 : vector<16x12xf32>
    %c0_45 = arith.constant 0 : index
    %c0_46 = arith.constant 0 : index
    %109 = vector.load %arg6[%c0_45, %c0_46] : memref<12x96xf32, #tpu.memory_space<vmem>>, vector<12x96xf32>
    %cst_47 = arith.constant dense<0.000000e+00> : vector<16x96xf32>
    %110 = tpu.matmul %108, %109, %cst_47 {dimension_numbers = #tpu.dot_dimension_numbers<[1], [0], [0], [1], [0, 0, 1, 1], [], []>} : vector<16x12xf32>, vector<12x96xf32>, vector<16x96xf32> -> vector<16x96xf32>
    %111 = arith.mulf %70, %110 : vector<16x96xf32>
    %c0_48 = arith.constant 0 : index
    %c0_49 = arith.constant 0 : index
    %112 = vector.load %arg7[%c0_48, %c0_49] : memref<16x96xf32, #tpu.memory_space<vmem>>, vector<16x96xf32>
    tpu.vector_store %arg7[%c0_48, %c0_49], %111 {strides = array<i32>} : memref<16x96xf32, #tpu.memory_space<vmem>>, vector<16x96xf32>,
    return
  }
  func.func @transform_0(%arg0: i32) -> (i32, i32) {
    %c0_i32 = arith.constant 0 : i32
    %c0_i32_0 = arith.constant 0 : i32
    return %arg0, %c0_i32 : i32, i32
  }
  func.func @transform_1(%arg0: i32) -> (i32, i32) {
    %c0_i32 = arith.constant 0 : i32
    %c0_i32_0 = arith.constant 0 : i32
    %c0_i32_1 = arith.constant 0 : i32
    return %c0_i32, %c0_i32_0 : i32, i32
  }
  func.func @transform_2(%arg0: i32) -> (i32, i32) {
    %c0_i32 = arith.constant 0 : i32
    %c0_i32_0 = arith.constant 0 : i32
    %c0_i32_1 = arith.constant 0 : i32
    return %c0_i32, %c0_i32_0 : i32, i32
  }
  func.func @transform_3(%arg0: i32) -> (i32, i32) {
    %c0_i32 = arith.constant 0 : i32
    %c0_i32_0 = arith.constant 0 : i32
    %c0_i32_1 = arith.constant 0 : i32
    return %c0_i32, %c0_i32_0 : i32, i32
  }
  func.func @transform_4(%arg0: i32) -> (i32, i32) {
    %c0_i32 = arith.constant 0 : i32
    %c0_i32_0 = arith.constant 0 : i32
    %c0_i32_1 = arith.constant 0 : i32
    return %c0_i32, %c0_i32_0 : i32, i32
  }
  func.func @transform_5(%arg0: i32) -> (i32, i32) {
    %c0_i32 = arith.constant 0 : i32
    %c0_i32_0 = arith.constant 0 : i32
    %c0_i32_1 = arith.constant 0 : i32
    return %c0_i32, %c0_i32_0 : i32, i32
  }
  func.func @transform_6(%arg0: i32) -> (i32, i32) {
    %c0_i32 = arith.constant 0 : i32
    %c0_i32_0 = arith.constant 0 : i32
    return %arg0, %c0_i32 : i32, i32
  }
}

</mosaic_0001>

<llo_original>
// kernel: tpu_custom_call.1
$region0: #{tpu_custom_call.1}
  #allocation0 [shape = 'u32[]', space=smem, size = 0x4, offset = 0x4, fixed_abs, tag = 'smem constant byte address 0x4 - core index']
  #allocation1 [shape = 'u32[144,128]{1,0:T(1,128)}', space=vmem, size = 0x12000, scoped, tag = 'internal scratch']
  %s0 = inlined_call_operand.vmem [shape: f32[16,32], index: 0, kind: input, shape index: {}]
  %s1 = inlined_call_operand.vmem [shape: f32[32,96], index: 1, kind: input, shape index: {}]
  %s2 = inlined_call_operand.vmem [shape: f32[1,96], index: 2, kind: input, shape index: {}]
  %s3 = inlined_call_operand.vmem [shape: f32[1,96], index: 3, kind: input, shape index: {}]
  %s4 = inlined_call_operand.vmem [shape: f32[96,12], index: 4, kind: input, shape index: {}]
  %s5 = inlined_call_operand.vmem [shape: f32[12,96], index: 5, kind: input, shape index: {}]
  %s6 = inlined_call_operand.hbm [shape: f32[16,96], index: 6, kind: output, shape index: {}]
  %s7 = sld [smem:[#allocation0]]
  $region34: #{tpu_custom_call.1} parent=0
    _
  %s9 = ssub.s32 1, %s7
  %s10 = scalar_select 0, %s9, %s7
  $region1: #{tpu_custom_call.1} parent=0
    #allocation2 [shape = 'u8[8192]{0}', space=vmem, size = 0x2000, scoped, tag = 'output window, operand 0, single buffered']
    #allocation3 [shape = 's32[1]{0}', space=sflag, size = 0x4, scoped, tag = 'scoped memory for tpu_custom_call.1']
    %11 = vsyncpa [#allocation3], 0
    // Predicated region
    $region2: #{tpu_custom_call.1} parent=1 // pred_check
      _
    $region3: #{tpu_custom_call.1} parent=1 // pred_check_branch
      %13 = sbr.rel (0) target = $region5
    $region4: #{tpu_custom_call.1} parent=1 // pred_region
      _
    $region5: #{tpu_custom_call.1} parent=1 // pred_fallthru
      _
    // Predicated region
    $region6: #{tpu_custom_call.1} parent=1 // pred_check
      _
    $region7: #{tpu_custom_call.1} parent=1 // pred_check_branch
      %15 = sbr.rel (0) target = $region9
    $region8: #{tpu_custom_call.1} parent=1 // pred_region
      _
    $region9: #{tpu_custom_call.1} parent=1 // pred_fallthru
      _
    // Predicated region
    $region10: #{tpu_custom_call.1} parent=1 // pred_check
      _
    $region11: #{tpu_custom_call.1} parent=1 // pred_check_branch
      %17 = sbr.rel (0) target = $region13
    $region12: #{tpu_custom_call.1} parent=1 // pred_region
      _
    $region13: #{tpu_custom_call.1} parent=1 // pred_fallthru
      _
    // Predicated region
    $region14: #{tpu_custom_call.1} parent=1 // pred_check
      _
    $region15: #{tpu_custom_call.1} parent=1 // pred_check_branch
      %19 = sbr.rel (0) target = $region17
    $region16: #{tpu_custom_call.1} parent=1 // pred_region
      _
    $region17: #{tpu_custom_call.1} parent=1 // pred_fallthru
      _
    // Predicated region
    $region18: #{tpu_custom_call.1} parent=1 // pred_check
      _
    $region19: #{tpu_custom_call.1} parent=1 // pred_check_branch
      %21 = sbr.rel (0) target = $region21
    $region20: #{tpu_custom_call.1} parent=1 // pred_region
      _
    $region21: #{tpu_custom_call.1} parent=1 // pred_fallthru
      _
    // Predicated region
    $region22: #{tpu_custom_call.1} parent=1 // pred_check
      _
    $region23: #{tpu_custom_call.1} parent=1 // pred_check_branch
      %23 = sbr.rel (0) target = $region25
    $region24: #{tpu_custom_call.1} parent=1 // pred_region
      _
    $region25: #{tpu_custom_call.1} parent=1 // pred_fallthru
      _
    %v24 = vld [vmem:[%s0] sm:$0xff]
    %v25 = vld [vmem:[%s0 + $0x8] sm:$0xff]
    %v26 = vmul.f32 %v24, %v24
    %v27 = vmul.f32 %v25, %v25
    %vm28 = vcmask 261120
    %v29 = vsel %vm28, %v26, 0.0
    %30 = vadd.xlane.f32.xlu0 %v29
    %v31 = vpop.xlane.xlu0 %30
    %v32 = vsel %vm28, %v27, 0.0
    %33 = vadd.xlane.f32.xlu0 %v32
    %v34 = vpop.xlane.xlu0 %33
    %v35 = vld [vmem:[%s1] sm:$0xff]
    %v36 = vld [vmem:[%s1 + $0x8] sm:$0xff]
    %v37 = vld [vmem:[%s1 + $0x10] sm:$0xff]
    %v38 = vld [vmem:[%s1 + $0x18] sm:$0xff]
    %v40 = vsel %vm28, %v24, 0
    %v43 = vsel %vm28, %v25, 0
    %45 = vmatprep.subr.mxu0 0.0
    %46 = vmatpush1.msra.mxu0 0.0
    %47 = vmatprep.subr.mxu0 0.0
    %48 = vmatpush1.msra.mxu0 0.0
    %49 = vmatprep.subr.mxu0 0.0
    %50 = vmatpush1.msra.mxu0 0.0
    %51 = vmatprep.subr.mxu0 0.0
    %52 = vmatpush1.msra.mxu0 0.0
    %53 = vmatprep.subr.mxu0 0.0
    %54 = vmatpush1.msra.mxu0 0.0
    %55 = vmatprep.subr.mxu0 0.0
    %56 = vmatpush1.msra.mxu0 0.0
    %57 = vmatprep.subr.mxu0 0.0
    %58 = vmatpush1.msra.mxu0 0.0
    %59 = vmatprep.subr.mxu0 0.0
    %60 = vmatpush1.msra.mxu0 0.0
    %61 = vmatprep.subr.mxu0 0.0
    %62 = vmatpush1.msra.mxu0 0.0
    %63 = vmatprep.subr.mxu0 0.0
    %64 = vmatpush1.msra.mxu0 0.0
    %65 = vmatprep.subr.mxu0 0.0
    %66 = vmatpush1.msra.mxu0 0.0
    %67 = vmatprep.subr.mxu0 0.0
    %68 = vmatpush1.msra.mxu0 0.0
    %69 = vmatprep.subr.mxu0 0.0
    %70 = vmatpush1.msra.mxu0 %v38
    %71 = vmatprep.subr.mxu0 0.0
    %72 = vmatpush1.msra.mxu0 %v37
    %73 = vmatprep.subr.mxu0 0.0
    %74 = vmatpush1.msra.mxu0 %v36
    %75 = vmatprep.subr.mxu0 0.0
    %76 = vmatpush1.msra.mxu0 %v35
    %77 = vmatprep.subr.mxu0 0.0
    %78 = vmatpush2.msra.mxu0 0.0
    %79 = vmatprep.subr.mxu0 0.0
    %80 = vmatpush2.msra.mxu0 0.0
    %81 = vmatprep.subr.mxu0 0.0
    %82 = vmatpush2.msra.mxu0 0.0
    %83 = vmatprep.subr.mxu0 0.0
    %84 = vmatpush2.msra.mxu0 0.0
    %85 = vmatprep.subr.mxu0 0.0
    %86 = vmatpush2.msra.mxu0 0.0
    %87 = vmatprep.subr.mxu0 0.0
    %88 = vmatpush2.msra.mxu0 0.0
    %89 = vmatprep.subr.mxu0 0.0
    %90 = vmatpush2.msra.mxu0 0.0
    %91 = vmatprep.subr.mxu0 0.0
    %92 = vmatpush2.msra.mxu0 0.0
    %93 = vmatprep.subr.mxu0 0.0
    %94 = vmatpush2.msra.mxu0 0.0
    %95 = vmatprep.subr.mxu0 0.0
    %96 = vmatpush2.msra.mxu0 0.0
    %97 = vmatprep.subr.mxu0 0.0
    %98 = vmatpush2.msra.mxu0 0.0
    %99 = vmatprep.subr.mxu0 0.0
    %100 = vmatpush2.msra.mxu0 0.0
    %101 = vmatprep.subr.mxu0 0.0
    %102 = vmatpush2.msra.mxu0 0.0
    %103 = vmatprep.subr.mxu0 0.0
    %104 = vmatpush2.msra.mxu0 0.0
    %105 = vmatprep.subr.mxu0 0.0
    %106 = vmatpush2.msra.mxu0 0.0
    %107 = vmatprep.subr.mxu0 0.0
    %108 = vmatpush2.msra.mxu0 0.0
    %109 = vmatprep.mubr.f32.mxu0 0.0
    %110 = vmatmul.mubr.f32.gmra.mxu0 %v40
    %v111 = vpop.f32.mrf.mxu0
    %v112 = vadd.f32 0.0, %v111
    %v113 = vpop.f32.mrf.mxu0
    %114 = vmatprep.mubr.f32.mxu0 0.0
    %115 = vmatmul.mubr.f32.gmra.mxu0 %v43
    %v116 = vpop.f32.mrf.mxu0
    %v117 = vadd.f32 0.0, %v116
    %v118 = vpop.f32.mrf.mxu0
    %119 = vdwg.mxu0
    %v120 = vld [vmem:[%s3] sm:$0x1]
    %v121 = vmul.f32 %v120, 2.0
    %v122 = vmul.f32 %v121, 1.442695
    %v123 = vpow.pop %v122
    %v124 = vsub.f32 0.0, %v121
    %v125 = vmul.f32 %v124, 1.442695
    %v126 = vpow.pop %v125
    %v127 = vadd.f32 %v123, %v126
    %v128 = vmul.f32 %v127, 0.5
    %v129 = vsub.f32 %v123, %v126
    %v130 = vmul.f32 %v129, 0.5
    %v131 = vsub.f32 1.0, %v31
    %v132 = vsub.f32 1.0, %v34
    %v133 = vmax.f32 %v131, 1e-15
    %v134 = vmax.f32 %v132, 1e-15
    %v135 = vrcp.pop %v133
    %v136 = vmul.f32 1.0, %v135
    %v137 = vrcp.pop %v134
    %v138 = vmul.f32 1.0, %v137
    %v139 = vmul.f32 %v112, 2.0
    %v140 = vmul.f32 %v117, 2.0
    %v142 = vlaneseq
    %v143 = vshrl.u32 %v142, 7
    %v144 = vsub.s32 0, %v143
    %v145 = vrot.slane %v128, %v144
    %v147 = vmul.f32 %v139, %v145
    %v148 = vmul.f32 %v140, %v145
    %v149 = vadd.f32 %v31, 1.0
    %v150 = vadd.f32 %v34, 1.0
    %v152 = vlaneseq
    %v153 = vshrl.u32 %v152, 7
    %v154 = vsub.s32 0, %v153
    %v155 = vrot.slane %v130, %v154
    %v157 = vmul.f32 %v149, %v155
    %v158 = vmul.f32 %v150, %v155
    %v159 = vsub.f32 %v147, %v157
    %v160 = vsub.f32 %v148, %v158
    %v161 = vmul.f32 %v159, %v136
    %v162 = vmul.f32 %v160, %v138
    %v163 = vld [vmem:[%s2] sm:$0x1]
    %v164 = vmul.f32 %v163, 2.0
    %v165 = vand.u32 2147483647, %v161
    %v166 = vand.u32 2147483647, %v162
    %v167 = vmul.f32 %v165, %v165
    %v168 = vmul.f32 %v166, %v166
    %v169 = vadd.f32 %v167, 1.0
    %v170 = vadd.f32 %v168, 1.0
    %v171 = vrsqrt.pop %v169
    %v172 = vmul.f32 %v169, %v171
    %vm173 = vcmp.eq.f32.partialorder %v169, inf
    %v174 = vsel %vm173, %v169, %v172
    %vm175 = vcmp.eq.f32.partialorder %v169, 0.0
    %v176 = vand.u32 %v169, 2147483648
    %v177 = vsel %vm175, %v176, %v174
    %v178 = vrsqrt.pop %v170
    %v179 = vmul.f32 %v170, %v178
    %vm180 = vcmp.eq.f32.partialorder %v170, inf
    %v181 = vsel %vm180, %v170, %v179
    %vm182 = vcmp.eq.f32.partialorder %v170, 0.0
    %v183 = vand.u32 %v170, 2147483648
    %v184 = vsel %vm182, %v183, %v181
    %v185 = vadd.f32 %v165, %v177
    %v186 = vadd.f32 %v166, %v184
    %v187 = vlog2.pop %v185
    %v188 = vmul.f32 %v187, 0.6931472
    %v189 = vlog2.pop %v186
    %v190 = vmul.f32 %v189, 0.6931472
    %vm191 = vcmp.ge.f32.partialorder %v161, 0.0
    %vm192 = vcmp.ge.f32.partialorder %v162, 0.0
    %v193 = vsub.f32 0.0, %v188
    %v194 = vsub.f32 0.0, %v190
    %v195 = vsel %vm191, %v188, %v193
    %v196 = vsel %vm192, %v190, %v194
    %v198 = vlaneseq
    %v199 = vshrl.u32 %v198, 7
    %v200 = vsub.s32 0, %v199
    %v201 = vrot.slane %v164, %v200
    %v203 = vmul.f32 %v201, %v195
    %v204 = vmul.f32 %v201, %v196
    %v205 = vmax.f32 %v203, -80.0
    %v206 = vmax.f32 %v204, -80.0
    %v207 = vmin.f32 %v205, 80.0
    %v208 = vmin.f32 %v206, 80.0
    %v209 = vmul.f32 %v207, 1.442695
    %v210 = vpow.pop %v209
    %v211 = vmul.f32 %v208, 1.442695
    %v212 = vpow.pop %v211
    %v213 = vsub.f32 0.0, %v207
    %v214 = vsub.f32 0.0, %v208
    %v215 = vmul.f32 %v213, 1.442695
    %v216 = vpow.pop %v215
    %v217 = vmul.f32 %v214, 1.442695
    %v218 = vpow.pop %v217
    %v219 = vsub.f32 %v210, %v216
    %v220 = vsub.f32 %v212, %v218
    %v221 = vmul.f32 %v219, 0.5
    %v222 = vmul.f32 %v220, 0.5
    %v223 = vmul.f32 %v221, %v221
    %v224 = vmul.f32 %v222, %v222
    %v225 = vld [vmem:[%s4] sm:$0xff]
    %v226 = vld [vmem:[%s4 + $0x8] sm:$0xff]
    %v227 = vld [vmem:[%s4 + $0x10] sm:$0xff]
    %v228 = vld [vmem:[%s4 + $0x18] sm:$0xff]
    %v229 = vld [vmem:[%s4 + $0x20] sm:$0xff]
    %v230 = vld [vmem:[%s4 + $0x28] sm:$0xff]
    %v231 = vld [vmem:[%s4 + $0x30] sm:$0xff]
    %v232 = vld [vmem:[%s4 + $0x38] sm:$0xff]
    %v233 = vld [vmem:[%s4 + $0x40] sm:$0xff]
    %v234 = vld [vmem:[%s4 + $0x48] sm:$0xff]
    %v235 = vld [vmem:[%s4 + $0x50] sm:$0xff]
    %v236 = vld [vmem:[%s4 + $0x58] sm:$0xff]
    %vm237 = vcmask 785408
    %v239 = vsel %vm237, %v223, 0
    %v242 = vsel %vm237, %v224, 0
    %244 = vmatprep.subr.mxu0 0.0
    %245 = vmatpush1.msra.mxu0 0.0
    %246 = vmatprep.subr.mxu0 0.0
    %247 = vmatpush1.msra.mxu0 0.0
    %248 = vmatprep.subr.mxu0 0.0
    %249 = vmatpush1.msra.mxu0 0.0
    %250 = vmatprep.subr.mxu0 0.0
    %251 = vmatpush1.msra.mxu0 0.0
    %252 = vmatprep.subr.mxu0 0.0
    %253 = vmatpush1.msra.mxu0 %v236
    %254 = vmatprep.subr.mxu0 0.0
    %255 = vmatpush1.msra.mxu0 %v235
    %256 = vmatprep.subr.mxu0 0.0
    %257 = vmatpush1.msra.mxu0 %v234
    %258 = vmatprep.subr.mxu0 0.0
    %259 = vmatpush1.msra.mxu0 %v233
    %260 = vmatprep.subr.mxu0 0.0
    %261 = vmatpush1.msra.mxu0 %v232
    %262 = vmatprep.subr.mxu0 0.0
    %263 = vmatpush1.msra.mxu0 %v231
    %264 = vmatprep.subr.mxu0 0.0
    %265 = vmatpush1.msra.mxu0 %v230
    %266 = vmatprep.subr.mxu0 0.0
    %267 = vmatpush1.msra.mxu0 %v229
    %268 = vmatprep.subr.mxu0 0.0
    %269 = vmatpush1.msra.mxu0 %v228
    %270 = vmatprep.subr.mxu0 0.0
    %271 = vmatpush1.msra.mxu0 %v227
    %272 = vmatprep.subr.mxu0 0.0
    %273 = vmatpush1.msra.mxu0 %v226
    %274 = vmatprep.subr.mxu0 0.0
    %275 = vmatpush1.msra.mxu0 %v225
    %276 = vmatprep.subr.mxu0 0.0
    %277 = vmatpush2.msra.mxu0 0.0
    %278 = vmatprep.subr.mxu0 0.0
    %279 = vmatpush2.msra.mxu0 0.0
    %280 = vmatprep.subr.mxu0 0.0
    %281 = vmatpush2.msra.mxu0 0.0
    %282 = vmatprep.subr.mxu0 0.0
    %283 = vmatpush2.msra.mxu0 0.0
    %284 = vmatprep.subr.mxu0 0.0
    %285 = vmatpush2.msra.mxu0 0.0
    %286 = vmatprep.subr.mxu0 0.0
    %287 = vmatpush2.msra.mxu0 0.0
    %288 = vmatprep.subr.mxu0 0.0
    %289 = vmatpush2.msra.mxu0 0.0
    %290 = vmatprep.subr.mxu0 0.0
    %291 = vmatpush2.msra.mxu0 0.0
    %292 = vmatprep.subr.mxu0 0.0
    %293 = vmatpush2.msra.mxu0 0.0
    %294 = vmatprep.subr.mxu0 0.0
    %295 = vmatpush2.msra.mxu0 0.0
    %296 = vmatprep.subr.mxu0 0.0
    %297 = vmatpush2.msra.mxu0 0.0
    %298 = vmatprep.subr.mxu0 0.0
    %299 = vmatpush2.msra.mxu0 0.0
    %300 = vmatprep.subr.mxu0 0.0
    %301 = vmatpush2.msra.mxu0 0.0
    %302 = vmatprep.subr.mxu0 0.0
    %303 = vmatpush2.msra.mxu0 0.0
    %304 = vmatprep.subr.mxu0 0.0
    %305 = vmatpush2.msra.mxu0 0.0
    %306 = vmatprep.subr.mxu0 0.0
    %307 = vmatpush2.msra.mxu0 0.0
    %308 = vmatprep.mubr.f32.mxu0 0.0
    %309 = vmatmul.mubr.f32.gmra.mxu0 %v239
    %v310 = vpop.f32.mrf.mxu0
    %v311 = vadd.f32 0.0, %v310
    %v312 = vpop.f32.mrf.mxu0
    %313 = vmatprep.mubr.f32.mxu0 0.0
    %314 = vmatmul.mubr.f32.gmra.mxu0 %v242
    %v315 = vpop.f32.mrf.mxu0
    %v316 = vadd.f32 0.0, %v315
    %v317 = vpop.f32.mrf.mxu0
    %318 = vdwg.mxu0
    %v319 = vrsqrt.pop %v311
    %v320 = vmul.f32 %v311, %v319
    %vm321 = vcmp.eq.f32.partialorder %v311, inf
    %v322 = vsel %vm321, %v311, %v320
    %vm323 = vcmp.eq.f32.partialorder %v311, 0.0
    %v324 = vand.u32 %v311, 2147483648
    %v325 = vsel %vm323, %v324, %v322
    %v326 = vrsqrt.pop %v316
    %v327 = vmul.f32 %v316, %v326
    %vm328 = vcmp.eq.f32.partialorder %v316, inf
    %v329 = vsel %vm328, %v316, %v327
    %vm330 = vcmp.eq.f32.partialorder %v316, 0.0
    %v331 = vand.u32 %v316, 2147483648
    %v332 = vsel %vm330, %v331, %v329
    %v333 = vadd.f32 %v311, 1.0
    %v334 = vadd.f32 %v316, 1.0
    %v335 = vrsqrt.pop %v333
    %v336 = vmul.f32 %v333, %v335
    %vm337 = vcmp.eq.f32.partialorder %v333, inf
    %v338 = vsel %vm337, %v333, %v336
    %vm339 = vcmp.eq.f32.partialorder %v333, 0.0
    %v340 = vand.u32 %v333, 2147483648
    %v341 = vsel %vm339, %v340, %v338
    %v342 = vrsqrt.pop %v334
    %v343 = vmul.f32 %v334, %v342
    %vm344 = vcmp.eq.f32.partialorder %v334, inf
    %v345 = vsel %vm344, %v334, %v343
    %vm346 = vcmp.eq.f32.partialorder %v334, 0.0
    %v347 = vand.u32 %v334, 2147483648
    %v348 = vsel %vm346, %v347, %v345
    %v349 = vadd.f32 %v341, 1.0
    %v350 = vadd.f32 %v348, 1.0
    %v351 = vrcp.pop %v349
    %v352 = vmul.f32 %v325, %v351
    %v353 = vrcp.pop %v350
    %v354 = vmul.f32 %v332, %v353
    %v355 = vmin.f32 %v352, 0.996
    %v356 = vmin.f32 %v354, 0.996
    %v357 = vmax.f32 %v355, -0.9999999
    %v358 = vmax.f32 %v356, -0.9999999
    %v359 = vmin.f32 %v357, 0.9999999
    %v360 = vmin.f32 %v358, 0.9999999
    %v361 = vadd.f32 %v359, 1.0
    %v362 = vadd.f32 %v360, 1.0
    %v363 = vsub.f32 1.0, %v359
    %v364 = vsub.f32 1.0, %v360
    %v365 = vrcp.pop %v363
    %v366 = vmul.f32 %v361, %v365
    %v367 = vrcp.pop %v364
    %v368 = vmul.f32 %v362, %v367
    %v369 = vlog2.pop %v366
    %v370 = vmul.f32 %v369, 0.6931472
    %v371 = vlog2.pop %v368
    %v372 = vmul.f32 %v371, 0.6931472
    %v373 = vmul.f32 %v370, 0.5
    %v374 = vmul.f32 %v372, 0.5
    %v375 = vmul.f32 %v373, 2.0472677
    %v376 = vmul.f32 %v374, 2.0472677
    %v377 = vtanh.pop %v375
    %v378 = vtanh.pop %v376
    %v379 = vmin.f32 %v377, 0.996
    %v380 = vmin.f32 %v378, 0.996
    %v381 = vmax.f32 %v325, 1e-15
    %v382 = vmax.f32 %v332, 1e-15
    %v383 = vrcp.pop %v381
    %v384 = vmul.f32 %v379, %v383
    %v385 = vrcp.pop %v382
    %v386 = vmul.f32 %v380, %v385
    %v387 = vld [vmem:[%s5] sm:$0xff]
    %v388 = vld [vmem:[%s5 + $0x8] sm:$0xf]
    %vm389 = vcmask 97280
    %v391 = vsel %vm389, %v384, 0
    %v394 = vsel %vm389, %v386, 0
    %vm396 = vcmask 1043456
    %v398 = vsel %vm396, %v388, 0
    %400 = vmatprep.subr.mxu0 0.0
    %401 = vmatpush1.msra.mxu0 0.0
    %402 = vmatprep.subr.mxu0 0.0
    %403 = vmatpush1.msra.mxu0 0.0
    %404 = vmatprep.subr.mxu0 0.0
    %405 = vmatpush1.msra.mxu0 0.0
    %406 = vmatprep.subr.mxu0 0.0
    %407 = vmatpush1.msra.mxu0 0.0
    %408 = vmatprep.subr.mxu0 0.0
    %409 = vmatpush1.msra.mxu0 0.0
    %410 = vmatprep.subr.mxu0 0.0
    %411 = vmatpush1.msra.mxu0 0.0
    %412 = vmatprep.subr.mxu0 0.0
    %413 = vmatpush1.msra.mxu0 0.0
    %414 = vmatprep.subr.mxu0 0.0
    %415 = vmatpush1.msra.mxu0 0.0
    %416 = vmatprep.subr.mxu0 0.0
    %417 = vmatpush1.msra.mxu0 0.0
    %418 = vmatprep.subr.mxu0 0.0
    %419 = vmatpush1.msra.mxu0 0.0
    %420 = vmatprep.subr.mxu0 0.0
    %421 = vmatpush1.msra.mxu0 0.0
    %422 = vmatprep.subr.mxu0 0.0
    %423 = vmatpush1.msra.mxu0 0.0
    %424 = vmatprep.subr.mxu0 0.0
    %425 = vmatpush1.msra.mxu0 0.0
    %426 = vmatprep.subr.mxu0 0.0
    %427 = vmatpush1.msra.mxu0 0.0
    %428 = vmatprep.subr.mxu0 0.0
    %429 = vmatpush1.msra.mxu0 %v398
    %430 = vmatprep.subr.mxu0 0.0
    %431 = vmatpush1.msra.mxu0 %v387
    %432 = vmatprep.subr.mxu0 0.0
    %433 = vmatpush2.msra.mxu0 0.0
    %434 = vmatprep.subr.mxu0 0.0
    %435 = vmatpush2.msra.mxu0 0.0
    %436 = vmatprep.subr.mxu0 0.0
    %437 = vmatpush2.msra.mxu0 0.0
    %438 = vmatprep.subr.mxu0 0.0
    %439 = vmatpush2.msra.mxu0 0.0
    %440 = vmatprep.subr.mxu0 0.0
    %441 = vmatpush2.msra.mxu0 0.0
    %442 = vmatprep.subr.mxu0 0.0
    %443 = vmatpush2.msra.mxu0 0.0
    %444 = vmatprep.subr.mxu0 0.0
    %445 = vmatpush2.msra.mxu0 0.0
    %446 = vmatprep.subr.mxu0 0.0
    %447 = vmatpush2.msra.mxu0 0.0
    %448 = vmatprep.subr.mxu0 0.0
    %449 = vmatpush2.msra.mxu0 0.0
    %450 = vmatprep.subr.mxu0 0.0
    %451 = vmatpush2.msra.mxu0 0.0
    %452 = vmatprep.subr.mxu0 0.0
    %453 = vmatpush2.msra.mxu0 0.0
    %454 = vmatprep.subr.mxu0 0.0
    %455 = vmatpush2.msra.mxu0 0.0
    %456 = vmatprep.subr.mxu0 0.0
    %457 = vmatpush2.msra.mxu0 0.0
    %458 = vmatprep.subr.mxu0 0.0
    %459 = vmatpush2.msra.mxu0 0.0
    %460 = vmatprep.subr.mxu0 0.0
    %461 = vmatpush2.msra.mxu0 0.0
    %462 = vmatprep.subr.mxu0 0.0
    %463 = vmatpush2.msra.mxu0 0.0
    %464 = vmatprep.mubr.f32.mxu0 0.0
    %465 = vmatmul.mubr.f32.gmra.mxu0 %v391
    %v466 = vpop.f32.mrf.mxu0
    %v467 = vadd.f32 0.0, %v466
    %v468 = vpop.f32.mrf.mxu0
    %469 = vmatprep.mubr.f32.mxu0 0.0
    %470 = vmatmul.mubr.f32.gmra.mxu0 %v394
    %v471 = vpop.f32.mrf.mxu0
    %v472 = vadd.f32 0.0, %v471
    %v473 = vpop.f32.mrf.mxu0
    %474 = vdwg.mxu0
    %v475 = vmul.f32 %v221, %v467
    %v476 = vmul.f32 %v222, %v472
    %477 = vst.msk [vmem:[#allocation2] sm:$0xff] %vm237, %v475
    %478 = vst.msk [vmem:[#allocation2 + $0x8] sm:$0xff] %vm237, %v476
    // Predicated region
    $region26: #{tpu_custom_call.1} parent=1 // pred_check
      _
    $region27: #{tpu_custom_call.1} parent=1 // pred_check_branch
      %480 = sbr.rel (0) target = $region29
    $region28: #{tpu_custom_call.1} parent=1 // pred_region
      %s482 = ssub.s32 256, 256
      %483 = vsyncadd [#allocation3], %s482
      %s484 = sshll.u32 [#allocation2], 4
      %s485 = int_to_ptr.vmem [resolvable:$true] %s484
      %490 = dma.vmem_to_hbm [thread:$0]  %s485, 256, %s6, [#allocation3], 128, 128, 8
    $region29: #{tpu_custom_call.1} parent=1 // pred_fallthru
      _
    // Predicated region
    $region30: #{tpu_custom_call.1} parent=1 // pred_check
      _
    $region31: #{tpu_custom_call.1} parent=1 // pred_check_branch
      %492 = sbr.rel (0) target = $region33
    $region32: #{tpu_custom_call.1} parent=1 // pred_region
      %493 = dma.done [#allocation3], 256
    $region33: #{tpu_custom_call.1} parent=1 // pred_fallthru
      _
    %494 = vsyncpa [#allocation3], 1

// kernel: tpu_custom_call.1
$region0: #{tpu_custom_call.1}
  #allocation0 [shape = 'u32[]', space=smem, size = 0x4, offset = 0x4, fixed_abs, tag = 'smem constant byte address 0x4 - core index']
  #allocation1 [shape = 'u32[144,128]{1,0:T(1,128)}', space=vmem, size = 0x12000, scoped, tag = 'internal scratch']
  %s0 = inlined_call_operand.vmem [shape: f32[16,32], index: 0, kind: input, shape index: {}]
  %s1 = inlined_call_operand.vmem [shape: f32[32,96], index: 1, kind: input, shape index: {}]
  %s2 = inlined_call_operand.vmem [shape: f32[1,96], index: 2, kind: input, shape index: {}]
  %s3 = inlined_call_operand.vmem [shape: f32[1,96], index: 3, kind: input, shape index: {}]
  %s4 = inlined_call_operand.vmem [shape: f32[96,12], index: 4, kind: input, shape index: {}]
  %s5 = inlined_call_operand.vmem [shape: f32[12,96], index: 5, kind: input, shape index: {}]
  %s6 = inlined_call_operand.hbm [shape: f32[16,96], index: 6, kind: output, shape index: {}]
  %s7 = sld [smem:[#allocation0]]
  $region34: #{tpu_custom_call.1} parent=0
    _
  %s9 = ssub.s32 1, %s7
  %s10 = scalar_select 0, %s9, %s7
  $region1: #{tpu_custom_call.1} parent=0
    #allocation2 [shape = 'u8[8192]{0}', space=vmem, size = 0x2000, scoped, tag = 'output window, operand 0, single buffered']
    #allocation3 [shape = 's32[1]{0}', space=sflag, size = 0x4, scoped, tag = 'scoped memory for tpu_custom_call.1']
    %11 = vsyncpa [#allocation3], 0
    // Predicated region
    $region2: #{tpu_custom_call.1} parent=1 // pred_check
      _
    $region3: #{tpu_custom_call.1} parent=1 // pred_check_branch
      %13 = sbr.rel (0) target = $region5
    $region4: #{tpu_custom_call.1} parent=1 // pred_region
      _
    $region5: #{tpu_custom_call.1} parent=1 // pred_fallthru
      _
    // Predicated region
    $region6: #{tpu_custom_call.1} parent=1 // pred_check
      _
    $region7: #{tpu_custom_call.1} parent=1 // pred_check_branch
      %15 = sbr.rel (0) target = $region9
    $region8: #{tpu_custom_call.1} parent=1 // pred_region
      _
    $region9: #{tpu_custom_call.1} parent=1 // pred_fallthru
      _
    // Predicated region
    $region10: #{tpu_custom_call.1} parent=1 // pred_check
      _
    $region11: #{tpu_custom_call.1} parent=1 // pred_check_branch
      %17 = sbr.rel (0) target = $region13
    $region12: #{tpu_custom_call.1} parent=1 // pred_region
      _
    $region13: #{tpu_custom_call.1} parent=1 // pred_fallthru
      _
    // Predicated region
    $region14: #{tpu_custom_call.1} parent=1 // pred_check
      _
    $region15: #{tpu_custom_call.1} parent=1 // pred_check_branch
      %19 = sbr.rel (0) target = $region17
    $region16: #{tpu_custom_call.1} parent=1 // pred_region
      _
    $region17: #{tpu_custom_call.1} parent=1 // pred_fallthru
      _
    // Predicated region
    $region18: #{tpu_custom_call.1} parent=1 // pred_check
      _
    $region19: #{tpu_custom_call.1} parent=1 // pred_check_branch
      %21 = sbr.rel (0) target = $region21
    $region20: #{tpu_custom_call.1} parent=1 // pred_region
      _
    $region21: #{tpu_custom_call.1} parent=1 // pred_fallthru
      _
    // Predicated region
    $region22: #{tpu_custom_call.1} parent=1 // pred_check
      _
    $region23: #{tpu_custom_call.1} parent=1 // pred_check_branch
      %23 = sbr.rel (0) target = $region25
    $region24: #{tpu_custom_call.1} parent=1 // pred_region
      _
    $region25: #{tpu_custom_call.1} parent=1 // pred_fallthru
      _
    %v24 = vld [vmem:[%s0] sm:$0xff]
    %v25 = vld [vmem:[%s0 + $0x8] sm:$0xff]
    %v26 = vmul.f32 %v24, %v24
    %v27 = vmul.f32 %v25, %v25
    %vm28 = vcmask 261120
    %v29 = vsel %vm28, %v26, 0.0
    %30 = vadd.xlane.f32.xlu0 %v29
    %v31 = vpop.xlane.xlu0 %30
    %v32 = vsel %vm28, %v27, 0.0
    %33 = vadd.xlane.f32.xlu0 %v32
    %v34 = vpop.xlane.xlu0 %33
    %v35 = vld [vmem:[%s1] sm:$0xff]
    %v36 = vld [vmem:[%s1 + $0x8] sm:$0xff]
    %v37 = vld [vmem:[%s1 + $0x10] sm:$0xff]
    %v38 = vld [vmem:[%s1 + $0x18] sm:$0xff]
    %v40 = vsel %vm28, %v24, 0
    %v43 = vsel %vm28, %v25, 0
    %45 = vmatprep.subr.mxu0 0.0
    %46 = vmatpush1.msra.mxu0 0.0
    %47 = vmatprep.subr.mxu0 0.0
    %48 = vmatpush1.msra.mxu0 0.0
    %49 = vmatprep.subr.mxu0 0.0
    %50 = vmatpush1.msra.mxu0 0.0
    %51 = vmatprep.subr.mxu0 0.0
    %52 = vmatpush1.msra.mxu0 0.0
    %53 = vmatprep.subr.mxu0 0.0
    %54 = vmatpush1.msra.mxu0 0.0
    %55 = vmatprep.subr.mxu0 0.0
    %56 = vmatpush1.msra.mxu0 0.0
    %57 = vmatprep.subr.mxu0 0.0
    %58 = vmatpush1.msra.mxu0 0.0
    %59 = vmatprep.subr.mxu0 0.0
    %60 = vmatpush1.msra.mxu0 0.0
    %61 = vmatprep.subr.mxu0 0.0
    %62 = vmatpush1.msra.mxu0 0.0
    %63 = vmatprep.subr.mxu0 0.0
    %64 = vmatpush1.msra.mxu0 0.0
    %65 = vmatprep.subr.mxu0 0.0
    %66 = vmatpush1.msra.mxu0 0.0
    %67 = vmatprep.subr.mxu0 0.0
    %68 = vmatpush1.msra.mxu0 0.0
    %69 = vmatprep.subr.mxu0 0.0
    %70 = vmatpush1.msra.mxu0 %v38
    %71 = vmatprep.subr.mxu0 0.0
    %72 = vmatpush1.msra.mxu0 %v37
    %73 = vmatprep.subr.mxu0 0.0
    %74 = vmatpush1.msra.mxu0 %v36
    %75 = vmatprep.subr.mxu0 0.0
    %76 = vmatpush1.msra.mxu0 %v35
    %77 = vmatprep.subr.mxu0 0.0
    %78 = vmatpush2.msra.mxu0 0.0
    %79 = vmatprep.subr.mxu0 0.0
    %80 = vmatpush2.msra.mxu0 0.0
    %81 = vmatprep.subr.mxu0 0.0
    %82 = vmatpush2.msra.mxu0 0.0
    %83 = vmatprep.subr.mxu0 0.0
    %84 = vmatpush2.msra.mxu0 0.0
    %85 = vmatprep.subr.mxu0 0.0
    %86 = vmatpush2.msra.mxu0 0.0
    %87 = vmatprep.subr.mxu0 0.0
    %88 = vmatpush2.msra.mxu0 0.0
    %89 = vmatprep.subr.mxu0 0.0
    %90 = vmatpush2.msra.mxu0 0.0
    %91 = vmatprep.subr.mxu0 0.0
    %92 = vmatpush2.msra.mxu0 0.0
    %93 = vmatprep.subr.mxu0 0.0
    %94 = vmatpush2.msra.mxu0 0.0
    %95 = vmatprep.subr.mxu0 0.0
    %96 = vmatpush2.msra.mxu0 0.0
    %97 = vmatprep.subr.mxu0 0.0
    %98 = vmatpush2.msra.mxu0 0.0
    %99 = vmatprep.subr.mxu0 0.0
    %100 = vmatpush2.msra.mxu0 0.0
    %101 = vmatprep.subr.mxu0 0.0
    %102 = vmatpush2.msra.mxu0 0.0
    %103 = vmatprep.subr.mxu0 0.0
    %104 = vmatpush2.msra.mxu0 0.0
    %105 = vmatprep.subr.mxu0 0.0
    %106 = vmatpush2.msra.mxu0 0.0
    %107 = vmatprep.subr.mxu0 0.0
    %108 = vmatpush2.msra.mxu0 0.0
    %109 = vmatprep.mubr.f32.mxu0 0.0
    %110 = vmatmul.mubr.f32.gmra.mxu0 %v40
    %v111 = vpop.f32.mrf.mxu0
    %v112 = vadd.f32 0.0, %v111
    %v113 = vpop.f32.mrf.mxu0
    %114 = vmatprep.mubr.f32.mxu0 0.0
    %115 = vmatmul.mubr.f32.gmra.mxu0 %v43
    %v116 = vpop.f32.mrf.mxu0
    %v117 = vadd.f32 0.0, %v116
    %v118 = vpop.f32.mrf.mxu0
    %119 = vdwg.mxu0
    %v120 = vld [vmem:[%s3] sm:$0x1]
    %v121 = vmul.f32 %v120, 2.0
    %v122 = vmul.f32 %v121, 1.442695
    %v123 = vpow.pop %v122
    %v124 = vsub.f32 0.0, %v121
    %v125 = vmul.f32 %v124, 1.442695
    %v126 = vpow.pop %v125
    %v127 = vadd.f32 %v123, %v126
    %v128 = vmul.f32 %v127, 0.5
    %v129 = vsub.f32 %v123, %v126
    %v130 = vmul.f32 %v129, 0.5
    %v131 = vsub.f32 1.0, %v31
    %v132 = vsub.f32 1.0, %v34
    %v133 = vmax.f32 %v131, 1e-15
    %v134 = vmax.f32 %v132, 1e-15
    %v135 = vrcp.pop %v133
    %v136 = vmul.f32 1.0, %v135
    %v137 = vrcp.pop %v134
    %v138 = vmul.f32 1.0, %v137
    %v139 = vmul.f32 %v112, 2.0
    %v140 = vmul.f32 %v117, 2.0
    %v142 = vlaneseq
    %v143 = vshrl.u32 %v142, 7
    %v144 = vsub.s32 0, %v143
    %v145 = vrot.slane %v128, %v144
    %v147 = vmul.f32 %v139, %v145
    %v148 = vmul.f32 %v140, %v145
    %v149 = vadd.f32 %v31, 1.0
    %v150 = vadd.f32 %v34, 1.0
    %v152 = vlaneseq
    %v153 = vshrl.u32 %v152, 7
    %v154 = vsub.s32 0, %v153
    %v155 = vrot.slane %v130, %v154
    %v157 = vmul.f32 %v149, %v155
    %v158 = vmul.f32 %v150, %v155
    %v159 = vsub.f32 %v147, %v157
    %v160 = vsub.f32 %v148, %v158
    %v161 = vmul.f32 %v159, %v136
    %v162 = vmul.f32 %v160, %v138
    %v163 = vld [vmem:[%s2] sm:$0x1]
    %v164 = vmul.f32 %v163, 2.0
    %v165 = vand.u32 2147483647, %v161
    %v166 = vand.u32 2147483647, %v162
    %v167 = vmul.f32 %v165, %v165
    %v168 = vmul.f32 %v166, %v166
    %v169 = vadd.f32 %v167, 1.0
    %v170 = vadd.f32 %v168, 1.0
    %v171 = vrsqrt.pop %v169
    %v172 = vmul.f32 %v169, %v171
    %vm173 = vcmp.eq.f32.partialorder %v169, inf
    %v174 = vsel %vm173, %v169, %v172
    %vm175 = vcmp.eq.f32.partialorder %v169, 0.0
    %v176 = vand.u32 %v169, 2147483648
    %v177 = vsel %vm175, %v176, %v174
    %v178 = vrsqrt.pop %v170
    %v179 = vmul.f32 %v170, %v178
    %vm180 = vcmp.eq.f32.partialorder %v170, inf
    %v181 = vsel %vm180, %v170, %v179
    %vm182 = vcmp.eq.f32.partialorder %v170, 0.0
    %v183 = vand.u32 %v170, 2147483648
    %v184 = vsel %vm182, %v183, %v181
    %v185 = vadd.f32 %v165, %v177
    %v186 = vadd.f32 %v166, %v184
    %v187 = vlog2.pop %v185
    %v188 = vmul.f32 %v187, 0.6931472
    %v189 = vlog2.pop %v186
    %v190 = vmul.f32 %v189, 0.6931472
    %vm191 = vcmp.ge.f32.partialorder %v161, 0.0
    %vm192 = vcmp.ge.f32.partialorder %v162, 0.0
    %v193 = vsub.f32 0.0, %v188
    %v194 = vsub.f32 0.0, %v190
    %v195 = vsel %vm191, %v188, %v193
    %v196 = vsel %vm192, %v190, %v194
    %v198 = vlaneseq
    %v199 = vshrl.u32 %v198, 7
    %v200 = vsub.s32 0, %v199
    %v201 = vrot.slane %v164, %v200
    %v203 = vmul.f32 %v201, %v195
    %v204 = vmul.f32 %v201, %v196
    %v205 = vmax.f32 %v203, -80.0
    %v206 = vmax.f32 %v204, -80.0
    %v207 = vmin.f32 %v205, 80.0
    %v208 = vmin.f32 %v206, 80.0
    %v209 = vmul.f32 %v207, 1.442695
    %v210 = vpow.pop %v209
    %v211 = vmul.f32 %v208, 1.442695
    %v212 = vpow.pop %v211
    %v213 = vsub.f32 0.0, %v207
    %v214 = vsub.f32 0.0, %v208
    %v215 = vmul.f32 %v213, 1.442695
    %v216 = vpow.pop %v215
    %v217 = vmul.f32 %v214, 1.442695
    %v218 = vpow.pop %v217
    %v219 = vsub.f32 %v210, %v216
    %v220 = vsub.f32 %v212, %v218
    %v221 = vmul.f32 %v219, 0.5
    %v222 = vmul.f32 %v220, 0.5
    %v223 = vmul.f32 %v221, %v221
    %v224 = vmul.f32 %v222, %v222
    %v225 = vld [vmem:[%s4] sm:$0xff]
    %v226 = vld [vmem:[%s4 + $0x8] sm:$0xff]
    %v227 = vld [vmem:[%s4 + $0x10] sm:$0xff]
    %v228 = vld [vmem:[%s4 + $0x18] sm:$0xff]
    %v229 = vld [vmem:[%s4 + $0x20] sm:$0xff]
    %v230 = vld [vmem:[%s4 + $0x28] sm:$0xff]
    %v231 = vld [vmem:[%s4 + $0x30] sm:$0xff]
    %v232 = vld [vmem:[%s4 + $0x38] sm:$0xff]
    %v233 = vld [vmem:[%s4 + $0x40] sm:$0xff]
    %v234 = vld [vmem:[%s4 + $0x48] sm:$0xff]
    %v235 = vld [vmem:[%s4 + $0x50] sm:$0xff]
    %v236 = vld [vmem:[%s4 + $0x58] sm:$0xff]
    %vm237 = vcmask 785408
    %v239 = vsel %vm237, %v223, 0
    %v242 = vsel %vm237, %v224, 0
    %244 = vmatprep.subr.mxu0 0.0
    %245 = vmatpush1.msra.mxu0 0.0
    %246 = vmatprep.subr.mxu0 0.0
    %247 = vmatpush1.msra.mxu0 0.0
    %248 = vmatprep.subr.mxu0 0.0
    %249 = vmatpush1.msra.mxu0 0.0
    %250 = vmatprep.subr.mxu0 0.0
    %251 = vmatpush1.msra.mxu0 0.0
    %252 = vmatprep.subr.mxu0 0.0
    %253 = vmatpush1.msra.mxu0 %v236
    %254 = vmatprep.subr.mxu0 0.0
    %255 = vmatpush1.msra.mxu0 %v235
    %256 = vmatprep.subr.mxu0 0.0
    %257 = vmatpush1.msra.mxu0 %v234
    %258 = vmatprep.subr.mxu0 0.0
    %259 = vmatpush1.msra.mxu0 %v233
    %260 = vmatprep.subr.mxu0 0.0
    %261 = vmatpush1.msra.mxu0 %v232
    %262 = vmatprep.subr.mxu0 0.0
    %263 = vmatpush1.msra.mxu0 %v231
    %264 = vmatprep.subr.mxu0 0.0
    %265 = vmatpush1.msra.mxu0 %v230
    %266 = vmatprep.subr.mxu0 0.0
    %267 = vmatpush1.msra.mxu0 %v229
    %268 = vmatprep.subr.mxu0 0.0
    %269 = vmatpush1.msra.mxu0 %v228
    %270 = vmatprep.subr.mxu0 0.0
    %271 = vmatpush1.msra.mxu0 %v227
    %272 = vmatprep.subr.mxu0 0.0
    %273 = vmatpush1.msra.mxu0 %v226
    %274 = vmatprep.subr.mxu0 0.0
    %275 = vmatpush1.msra.mxu0 %v225
    %276 = vmatprep.subr.mxu0 0.0
    %277 = vmatpush2.msra.mxu0 0.0
    %278 = vmatprep.subr.mxu0 0.0
    %279 = vmatpush2.msra.mxu0 0.0
    %280 = vmatprep.subr.mxu0 0.0
    %281 = vmatpush2.msra.mxu0 0.0
    %282 = vmatprep.subr.mxu0 0.0
    %283 = vmatpush2.msra.mxu0 0.0
    %284 = vmatprep.subr.mxu0 0.0
    %285 = vmatpush2.msra.mxu0 0.0
    %286 = vmatprep.subr.mxu0 0.0
    %287 = vmatpush2.msra.mxu0 0.0
    %288 = vmatprep.subr.mxu0 0.0
    %289 = vmatpush2.msra.mxu0 0.0
    %290 = vmatprep.subr.mxu0 0.0
    %291 = vmatpush2.msra.mxu0 0.0
    %292 = vmatprep.subr.mxu0 0.0
    %293 = vmatpush2.msra.mxu0 0.0
    %294 = vmatprep.subr.mxu0 0.0
    %295 = vmatpush2.msra.mxu0 0.0
    %296 = vmatprep.subr.mxu0 0.0
    %297 = vmatpush2.msra.mxu0 0.0
    %298 = vmatprep.subr.mxu0 0.0
    %299 = vmatpush2.msra.mxu0 0.0
    %300 = vmatprep.subr.mxu0 0.0
    %301 = vmatpush2.msra.mxu0 0.0
    %302 = vmatprep.subr.mxu0 0.0
    %303 = vmatpush2.msra.mxu0 0.0
    %304 = vmatprep.subr.mxu0 0.0
    %305 = vmatpush2.msra.mxu0 0.0
    %306 = vmatprep.subr.mxu0 0.0
    %307 = vmatpush2.msra.mxu0 0.0
    %308 = vmatprep.mubr.f32.mxu0 0.0
    %309 = vmatmul.mubr.f32.gmra.mxu0 %v239
    %v310 = vpop.f32.mrf.mxu0
    %v311 = vadd.f32 0.0, %v310
    %v312 = vpop.f32.mrf.mxu0
    %313 = vmatprep.mubr.f32.mxu0 0.0
    %314 = vmatmul.mubr.f32.gmra.mxu0 %v242
    %v315 = vpop.f32.mrf.mxu0
    %v316 = vadd.f32 0.0, %v315
    %v317 = vpop.f32.mrf.mxu0
    %318 = vdwg.mxu0
    %v319 = vrsqrt.pop %v311
    %v320 = vmul.f32 %v311, %v319
    %vm321 = vcmp.eq.f32.partialorder %v311, inf
    %v322 = vsel %vm321, %v311, %v320
    %vm323 = vcmp.eq.f32.partialorder %v311, 0.0
    %v324 = vand.u32 %v311, 2147483648
    %v325 = vsel %vm323, %v324, %v322
    %v326 = vrsqrt.pop %v316
    %v327 = vmul.f32 %v316, %v326
    %vm328 = vcmp.eq.f32.partialorder %v316, inf
    %v329 = vsel %vm328, %v316, %v327
    %vm330 = vcmp.eq.f32.partialorder %v316, 0.0
    %v331 = vand.u32 %v316, 2147483648
    %v332 = vsel %vm330, %v331, %v329
    %v333 = vadd.f32 %v311, 1.0
    %v334 = vadd.f32 %v316, 1.0
    %v335 = vrsqrt.pop %v333
    %v336 = vmul.f32 %v333, %v335
    %vm337 = vcmp.eq.f32.partialorder %v333, inf
    %v338 = vsel %vm337, %v333, %v336
    %vm339 = vcmp.eq.f32.partialorder %v333, 0.0
    %v340 = vand.u32 %v333, 2147483648
    %v341 = vsel %vm339, %v340, %v338
    %v342 = vrsqrt.pop %v334
    %v343 = vmul.f32 %v334, %v342
    %vm344 = vcmp.eq.f32.partialorder %v334, inf
    %v345 = vsel %vm344, %v334, %v343
    %vm346 = vcmp.eq.f32.partialorder %v334, 0.0
    %v347 = vand.u32 %v334, 2147483648
    %v348 = vsel %vm346, %v347, %v345
    %v349 = vadd.f32 %v341, 1.0
    %v350 = vadd.f32 %v348, 1.0
    %v351 = vrcp.pop %v349
    %v352 = vmul.f32 %v325, %v351
    %v353 = vrcp.pop %v350
    %v354 = vmul.f32 %v332, %v353
    %v355 = vmin.f32 %v352, 0.996
    %v356 = vmin.f32 %v354, 0.996
    %v357 = vmax.f32 %v355, -0.9999999
    %v358 = vmax.f32 %v356, -0.9999999
    %v359 = vmin.f32 %v357, 0.9999999
    %v360 = vmin.f32 %v358, 0.9999999
    %v361 = vadd.f32 %v359, 1.0
    %v362 = vadd.f32 %v360, 1.0
    %v363 = vsub.f32 1.0, %v359
    %v364 = vsub.f32 1.0, %v360
    %v365 = vrcp.pop %v363
    %v366 = vmul.f32 %v361, %v365
    %v367 = vrcp.pop %v364
    %v368 = vmul.f32 %v362, %v367
    %v369 = vlog2.pop %v366
    %v370 = vmul.f32 %v369, 0.6931472
    %v371 = vlog2.pop %v368
    %v372 = vmul.f32 %v371, 0.6931472
    %v373 = vmul.f32 %v370, 0.5
    %v374 = vmul.f32 %v372, 0.5
    %v375 = vmul.f32 %v373, 2.0472677
    %v376 = vmul.f32 %v374, 2.0472677
    %v377 = vtanh.pop %v375
    %v378 = vtanh.pop %v376
    %v379 = vmin.f32 %v377, 0.996
    %v380 = vmin.f32 %v378, 0.996
    %v381 = vmax.f32 %v325, 1e-15
    %v382 = vmax.f32 %v332, 1e-15
    %v383 = vrcp.pop %v381
    %v384 = vmul.f32 %v379, %v383
    %v385 = vrcp.pop %v382
    %v386 = vmul.f32 %v380, %v385
    %v387 = vld [vmem:[%s5] sm:$0xff]
    %v388 = vld [vmem:[%s5 + $0x8] sm:$0xf]
    %vm389 = vcmask 97280
    %v391 = vsel %vm389, %v384, 0
    %v394 = vsel %vm389, %v386, 0
    %vm396 = vcmask 1043456
    %v398 = vsel %vm396, %v388, 0
    %400 = vmatprep.subr.mxu0 0.0
    %401 = vmatpush1.msra.mxu0 0.0
    %402 = vmatprep.subr.mxu0 0.0
    %403 = vmatpush1.msra.mxu0 0.0
    %404 = vmatprep.subr.mxu0 0.0
    %405 = vmatpush1.msra.mxu0 0.0
    %406 = vmatprep.subr.mxu0 0.0
    %407 = vmatpush1.msra.mxu0 0.0
    %408 = vmatprep.subr.mxu0 0.0
    %409 = vmatpush1.msra.mxu0 0.0
    %410 = vmatprep.subr.mxu0 0.0
    %411 = vmatpush1.msra.mxu0 0.0
    %412 = vmatprep.subr.mxu0 0.0
    %413 = vmatpush1.msra.mxu0 0.0
    %414 = vmatprep.subr.mxu0 0.0
    %415 = vmatpush1.msra.mxu0 0.0
    %416 = vmatprep.subr.mxu0 0.0
    %417 = vmatpush1.msra.mxu0 0.0
    %418 = vmatprep.subr.mxu0 0.0
    %419 = vmatpush1.msra.mxu0 0.0
    %420 = vmatprep.subr.mxu0 0.0
    %421 = vmatpush1.msra.mxu0 0.0
    %422 = vmatprep.subr.mxu0 0.0
    %423 = vmatpush1.msra.mxu0 0.0
    %424 = vmatprep.subr.mxu0 0.0
    %425 = vmatpush1.msra.mxu0 0.0
    %426 = vmatprep.subr.mxu0 0.0
    %427 = vmatpush1.msra.mxu0 0.0
    %428 = vmatprep.subr.mxu0 0.0
    %429 = vmatpush1.msra.mxu0 %v398
    %430 = vmatprep.subr.mxu0 0.0
    %431 = vmatpush1.msra.mxu0 %v387
    %432 = vmatprep.subr.mxu0 0.0
    %433 = vmatpush2.msra.mxu0 0.0
    %434 = vmatprep.subr.mxu0 0.0
    %435 = vmatpush2.msra.mxu0 0.0
    %436 = vmatprep.subr.mxu0 0.0
    %437 = vmatpush2.msra.mxu0 0.0
    %438 = vmatprep.subr.mxu0 0.0
    %439 = vmatpush2.msra.mxu0 0.0
    %440 = vmatprep.subr.mxu0 0.0
    %441 = vmatpush2.msra.mxu0 0.0
    %442 = vmatprep.subr.mxu0 0.0
    %443 = vmatpush2.msra.mxu0 0.0
    %444 = vmatprep.subr.mxu0 0.0
    %445 = vmatpush2.msra.mxu0 0.0
    %446 = vmatprep.subr.mxu0 0.0
    %447 = vmatpush2.msra.mxu0 0.0
    %448 = vmatprep.subr.mxu0 0.0
    %449 = vmatpush2.msra.mxu0 0.0
    %450 = vmatprep.subr.mxu0 0.0
    %451 = vmatpush2.msra.mxu0 0.0
    %452 = vmatprep.subr.mxu0 0.0
    %453 = vmatpush2.msra.mxu0 0.0
    %454 = vmatprep.subr.mxu0 0.0
    %455 = vmatpush2.msra.mxu0 0.0
    %456 = vmatprep.subr.mxu0 0.0
    %457 = vmatpush2.msra.mxu0 0.0
    %458 = vmatprep.subr.mxu0 0.0
    %459 = vmatpush2.msra.mxu0 0.0
    %460 = vmatprep.subr.mxu0 0.0
    %461 = vmatpush2.msra.mxu0 0.0
    %462 = vmatprep.subr.mxu0 0.0
    %463 = vmatpush2.msra.mxu0 0.0
    %464 = vmatprep.mubr.f32.mxu0 0.0
    %465 = vmatmul.mubr.f32.gmra.mxu0 %v391
    %v466 = vpop.f32.mrf.mxu0
    %v467 = vadd.f32 0.0, %v466
    %v468 = vpop.f32.mrf.mxu0
    %469 = vmatprep.mubr.f32.mxu0 0.0
    %470 = vmatmul.mubr.f32.gmra.mxu0 %v394
    %v471 = vpop.f32.mrf.mxu0
    %v472 = vadd.f32 0.0, %v471
    %v473 = vpop.f32.mrf.mxu0
    %474 = vdwg.mxu0
    %v475 = vmul.f32 %v221, %v467
    %v476 = vmul.f32 %v222, %v472
    %477 = vst.msk [vmem:[#allocation2] sm:$0xff] %vm237, %v475
    %478 = vst.msk [vmem:[#allocation2 + $0x8] sm:$0xff] %vm237, %v476
    // Predicated region
    $region26: #{tpu_custom_call.1} parent=1 // pred_check
      _
    $region27: #{tpu_custom_call.1} parent=1 // pred_check_branch
      %480 = sbr.rel (0) target = $region29
    $region28: #{tpu_custom_call.1} parent=1 // pred_region
      %s482 = ssub.s32 256, 256
      %483 = vsyncadd [#allocation3], %s482
      %s484 = sshll.u32 [#allocation2], 4
      %s485 = int_to_ptr.vmem [resolvable:$true] %s484
      %490 = dma.vmem_to_hbm [thread:$0]  %s485, 256, %s6, [#allocation3], 128, 128, 8
    $region29: #{tpu_custom_call.1} parent=1 // pred_fallthru
      _
    // Predicated region
    $region30: #{tpu_custom_call.1} parent=1 // pred_check
      _
    $region31: #{tpu_custom_call.1} parent=1 // pred_check_branch
      %492 = sbr.rel (0) target = $region33
    $region32: #{tpu_custom_call.1} parent=1 // pred_region
      %493 = dma.done [#allocation3], 256
    $region33: #{tpu_custom_call.1} parent=1 // pred_fallthru
      _
    %494 = vsyncpa [#allocation3], 1

</llo_original>
